<compile_context>
chip_gen: v6e
topology: v6e:2x2x1
jax: 0.10.0
libtpu: 0.0.40
codegen_flags: <defaults>
</compile_context>

<pallas_src>
import jax
import jax.numpy as jnp
from jax import lax
from jax.experimental import pallas as pl
from jax.experimental.pallas import tpu as pltpu

N_CATEGORIES = 0  # len(all_categories) in the reference script


# --------------------------------------------------------------------------
# Time-blocking helper.
# --------------------------------------------------------------------------
def _pick_time_block(T, B, max_tt=32):
    """Largest time block Tt dividing T such that the row block Tt*B is
    sublane-aligned (multiple of 8), unless one block covers the whole axis."""
    if T <= max_tt:
        return T
    for tt in range(max_tt, 0, -1):
        if T % tt == 0 and (tt * B) % 8 == 0:
            return tt
    return T  # fallback: single block over the whole sequence


# --------------------------------------------------------------------------
# Phase A: batched input projection  Yxh = X @ w1xh + b1h,  Yxo = X @ w1xo + b1o
# --------------------------------------------------------------------------
def _in_proj_kernel(x_ref, w1xh_ref, w1xo_ref, b1h_ref, b1o_ref,
                    yxh_ref, yxo_ref):
    x = x_ref[...]
    yxh_ref[...] = (jnp.dot(x, w1xh_ref[...], preferred_element_type=jnp.float32)
                    + b1h_ref[...]).astype(yxh_ref.dtype)
    yxo_ref[...] = (jnp.dot(x, w1xo_ref[...], preferred_element_type=jnp.float32)
                    + b1o_ref[...]).astype(yxo_ref.dtype)


# --------------------------------------------------------------------------
# Phase B: serial recurrence.  Hidden state carried directly in hT_ref
# (constant index_map -> VMEM-resident across the grid); w1hh resident.
# --------------------------------------------------------------------------
def _recurrence_kernel(yxh_ref, w1hh_ref, h0_ref, hall_ref, hT_ref):
    blk = pl.program_id(0)

    @pl.when(blk == 0)
    def _():
        hT_ref[...] = h0_ref[...]

    w1hh = w1hh_ref[...]          # hoisted: loop-invariant weight read
    h = hT_ref[...]
    Tt = yxh_ref.shape[0]

    def step(i, h):
        h_new = yxh_ref[i] + jnp.dot(h, w1hh,
                                     preferred_element_type=jnp.float32)
        hall_ref[i] = h_new
        return h_new

    h = lax.fori_loop(0, Tt, step, h, unroll=True)
    hT_ref[...] = h


# --------------------------------------------------------------------------
# Phase C: batched output head  (i2o hidden part, o2o, log_softmax).
# --------------------------------------------------------------------------
def _out_proj_kernel(yxo_ref, hprev_ref, hnew_ref,
                     w1ho_ref, w2h_ref, w2o_ref, b2_ref, out_ref):
    # o_t = i2o(combined_t) = Yxo[t] + h_{t-1} @ w1ho
    o = yxo_ref[...] + jnp.dot(hprev_ref[...], w1ho_ref[...],
                               preferred_element_type=jnp.float32)
    # o2o(cat(h_t, o_t)) with w_o2o split row-wise -> two dots, no in-kernel concat.
    o2 = (jnp.dot(hnew_ref[...], w2h_ref[...], preferred_element_type=jnp.float32)
          + jnp.dot(o, w2o_ref[...], preferred_element_type=jnp.float32)
          + b2_ref[...])

    # TODO(synk): nn.Dropout(0.1) is applied here in train mode in PyTorch;
    # eval-mode (identity) is implemented since torch's RNG mask is not reproducible.

    # LogSoftmax along the class axis (numerically stable).
    m = jnp.max(o2, axis=-1, keepdims=True)
    z = o2 - m
    lse = jnp.log(jnp.sum(jnp.exp(z), axis=-1, keepdims=True))
    out_ref[...] = (z - lse).astype(out_ref.dtype)


# --------------------------------------------------------------------------
# One-time parameter preparation (hoisted out of the step / sequence loop).
# --------------------------------------------------------------------------
def prepare_params(params, dtype=jnp.float32):
    """Transpose / split weights once.  Pass dtype=jnp.bfloat16 on v6e/v7x to
    halve resident weight bytes (f32 accumulation is kept in-kernel; loosen
    test tolerances in that case)."""
    H = params["b_i2h"].shape[-1]
    O = params["b_o2o"].shape[-1]
    in1 = params["w_i2h"].shape[-1]     # C + I + H
    CI = in1 - H
    w_i2h, w_i2o, w_o2o = params["w_i2h"], params["w_i2o"], params["w_o2o"]
    return {
        "w1xh": w_i2h[:, :CI].T.astype(dtype),        # (CI, H)
        "w1hh": w_i2h[:, CI:].T.astype(dtype),        # (H,  H)  recurrent
        "w1xo": w_i2o[:, :CI].T.astype(dtype),        # (CI, O)
        "w1ho": w_i2o[:, CI:].T.astype(dtype),        # (H,  O)
        "w2h":  w_o2o[:, :H].T.astype(dtype),         # (H,  O)
        "w2o":  w_o2o[:, H:].T.astype(dtype),         # (O,  O)
        "b1h":  params["b_i2h"].reshape(1, H).astype(jnp.float32),
        "b1o":  params["b_i2o"].reshape(1, O).astype(jnp.float32),
        "b2":   params["b_o2o"].reshape(1, O).astype(jnp.float32),
    }


# --------------------------------------------------------------------------
# Sequence forward: three pallas_calls (batched / serial / batched).
# --------------------------------------------------------------------------
def rnn_sequence_forward(category, xs, hidden0, fused):
    """category: (B, C), xs: (T, B, I), hidden0: (B, H)
       -> (log_probs (T, B, O), hidden_T (B, H))"""
    T, B, I = xs.shape
    C = category.shape[-1]
    H = hidden0.shape[-1]
    O = fused["b2"].shape[-1]

    # Category is fixed for the whole sequence: fold it into the per-step
    # input (no-op here since C == 0, kept for generality / exact semantics).
    if C > 0:
        xs = jnp.concatenate(
            [jnp.broadcast_to(category[None], (T, B, C)), xs], axis=2)
    CI = C + I

    Tt = _pick_time_block(T, B)
    nblk = T // Tt
    Rb = Tt * B                      # rows per block in the batched phases

    x2 = xs.reshape(T * B, CI)

    def const_spec(shape):
        return pl.BlockSpec(shape, lambda i: (0,) * len(shape))

    def row_spec(n):
        return pl.BlockSpec((Rb, n), lambda i: (i, 0))

    # ---- Phase A: batched input projection (MXU-friendly, M = T*B) --------
    yxh, yxo = pl.pallas_call(
        _in_proj_kernel,
        out_shape=(jax.ShapeDtypeStruct((T * B, H), jnp.float32),
                   jax.ShapeDtypeStruct((T * B, O), jnp.float32)),
        grid_spec=pltpu.PrefetchScalarGridSpec(
            num_scalar_prefetch=0, grid=(nblk,),
            in_specs=[row_spec(CI),
                      const_spec((CI, H)), const_spec((CI, O)),
                      const_spec((1, H)), const_spec((1, O))],
            out_specs=(row_spec(H), row_spec(O))),
        compiler_params=pltpu.CompilerParams(
            dimension_semantics=("parallel",)),
    )(x2, fused["w1xh"], fused["w1xo"], fused["b1h"], fused["b1o"])

    # ---- Phase B: serial recurrence (only h @ w1hh + Yxh[t] per step) ----
    h_all, h_T = pl.pallas_call(
        _recurrence_kernel,
        out_shape=(jax.ShapeDtypeStruct((T, B, H), jnp.float32),
                   jax.ShapeDtypeStruct((B, H), jnp.float32)),
        grid_spec=pltpu.PrefetchScalarGridSpec(
            num_scalar_prefetch=0, grid=(nblk,),
            in_specs=[pl.BlockSpec((Tt, B, H), lambda i: (i, 0, 0)),
                      const_spec((H, H)),
                      const_spec((B, H))],
            out_specs=(pl.BlockSpec((Tt, B, H), lambda i: (i, 0, 0)),
                       const_spec((B, H)))),
        compiler_params=pltpu.CompilerParams(
            dimension_semantics=("arbitrary",)),        # time = recurrence
    )(yxh.reshape(T, B, H), fused["w1hh"], hidden0)

    # Hidden state seen *by* step t (h_{t-1}); cheap XLA shift outside kernels.
    h_prev = jnp.concatenate([hidden0[None], h_all[:-1]], axis=0)

    # ---- Phase C: batched o2o + log_softmax (off the serial path) ---------
    logp = pl.pallas_call(
        _out_proj_kernel,
        out_shape=jax.ShapeDtypeStruct((T * B, O), jnp.float32),
        grid_spec=pltpu.PrefetchScalarGridSpec(
            num_scalar_prefetch=0, grid=(nblk,),
            in_specs=[row_spec(O), row_spec(H), row_spec(H),
                      const_spec((H, O)), const_spec((H, O)),
                      const_spec((O, O)), const_spec((1, O))],
            out_specs=row_spec(O)),
        compiler_params=pltpu.CompilerParams(
            dimension_semantics=("parallel",)),
    )(yxo, h_prev.reshape(T * B, H), h_all.reshape(T * B, H),
      fused["w1ho"], fused["w2h"], fused["w2o"], fused["b2"])

    return logp.reshape(T, B, O), h_T


def rnn_forward(category, inp, hidden, fused):
    """Single-step module semantics: forward(category, input, hidden)."""
    out, hid = rnn_sequence_forward(category, inp[None], hidden, fused)
    return out[0], hid


# --------------------------------------------------------------------------
# Parameter init (mimics nn.Linear: uniform +/- 1/sqrt(fan_in)).
# --------------------------------------------------------------------------
def init_params(key, input_size, hidden_size, output_size, n_categories=N_CATEGORIES):
    in1 = n_categories + input_size + hidden_size   # i2h / i2o fan-in
    in2 = hidden_size + output_size                 # o2o fan-in
    ks = jax.random.split(key, 6)

    def uni(k, shape, fan_in):
        bound = 1.0 / (fan_in ** 0.5)
        return jax.random.uniform(k, shape, jnp.float32, -bound, bound)

    return {
        "w_i2h": uni(ks[0], (hidden_size, in1), in1),
        "b_i2h": uni(ks[1], (hidden_size,), in1),
        "w_i2o": uni(ks[2], (output_size, in1), in1),
        "b_i2o": uni(ks[3], (output_size,), in1),
        "w_o2o": uni(ks[4], (output_size, in2), in2),
        "b_o2o": uni(ks[5], (output_size,), in2),
    }


# --------------------------------------------------------------------------
# Pure-JAX references (faithful module semantics).
# --------------------------------------------------------------------------
def rnn_forward_ref(category, inp, hidden, params):
    combined = jnp.concatenate([category, inp, hidden], axis=1)
    h = combined @ params["w_i2h"].T + params["b_i2h"]
    o = combined @ params["w_i2o"].T + params["b_i2o"]
    oc = jnp.concatenate([h, o], axis=1)
    o2 = oc @ params["w_o2o"].T + params["b_o2o"]
    return jax.nn.log_softmax(o2, axis=1), h


def rnn_sequence_ref(category, xs, hidden0, params):
    outs, h = [], hidden0
    for t in range(xs.shape[0]):
        o, h = rnn_forward_ref(category, xs[t], h, params)
        outs.append(o)
    return jnp.stack(outs), h


if __name__ == "__main__":
    B, INPUT, HIDDEN, OUTPUT, T = 2, 16, 32, 16, 8

    key = jax.random.PRNGKey(0)
    kp, kc, kx = jax.random.split(key, 3)
    params = init_params(kp, INPUT, HIDDEN, OUTPUT)
    fused = prepare_params(params)   # hoisted: transposes / splits done once

    category = jax.random.normal(kc, (B, N_CATEGORIES), jnp.float32)  # (B, 0)
    xs = jax.random.normal(kx, (T, B, INPUT), jnp.float32)            # (T, B, I)
    hidden0 = jnp.zeros((B, HIDDEN), jnp.float32)                     # initHidden()

    # Whole sequence: batched input proj -> serial recurrence -> batched head.
    out_seq, hid_T = jax.jit(rnn_sequence_forward)(category, xs, hidden0, fused)
    jax.block_until_ready((out_seq, hid_T))

    out_ref_seq, hid_ref_T = rnn_sequence_ref(category, xs, hidden0, params)
    assert out_seq.shape == (T, B, OUTPUT) and hid_T.shape == (B, HIDDEN)
    assert jnp.allclose(out_seq, out_ref_seq, atol=1e-4, rtol=1e-4)
    assert jnp.allclose(hid_T, hid_ref_T, atol=1e-4, rtol=1e-4)

    # Single-step check (exact module forward signature).
    out1, hid1 = jax.jit(rnn_forward)(category, xs[0], hidden0, fused)
    jax.block_until_ready((out1, hid1))
    out1_ref, hid1_ref = rnn_forward_ref(category, xs[0], hidden0, params)
    assert jnp.allclose(out1, out1_ref, atol=1e-4, rtol=1e-4)
    assert jnp.allclose(hid1, hid1_ref, atol=1e-4, rtol=1e-4)

    print("KERNEL_OK")
</pallas_src>

<mosaic_0001>
module attributes {stable_mosaic.version = 11 : i64} {
  func.func @_recurrence_kernel(%arg0: i32, %arg1: memref<8x2x32xf32, #tpu.memory_space<vmem>>, %arg2: memref<32x32xf32, #tpu.memory_space<vmem>>, %arg3: memref<2x32xf32, #tpu.memory_space<vmem>>, %arg4: memref<8x2x32xf32, #tpu.memory_space<vmem>>, %arg5: memref<2x32xf32, #tpu.memory_space<vmem>>) attributes {dimension_semantics = [#tpu.dimension_semantics<arbitrary>], iteration_bounds = array<i64: 1>, scalar_prefetch = 0 : i64, scratch_operands = 0 : i64, tpu.core_type = #tpu.core_type<tc>, window_params = [{transform_indices = @transform_0, window_bounds = array<i64: 8, 2, 32>}, {pipeline_mode = #tpu.pipeline_mode<synchronous>, transform_indices = @transform_1, window_bounds = array<i64: 32, 32>}, {pipeline_mode = #tpu.pipeline_mode<synchronous>, transform_indices = @transform_2, window_bounds = array<i64: 2, 32>}, {transform_indices = @transform_3, window_bounds = array<i64: 8, 2, 32>}, {pipeline_mode = #tpu.pipeline_mode<synchronous>, transform_indices = @transform_4, window_bounds = array<i64: 2, 32>}]} {
    %c0_i32 = arith.constant 0 : i32
    %0 = arith.cmpi eq, %arg0, %c0_i32 : i32
    %1 = arith.extui %0 : i1 to i32
    %c0_i32_0 = arith.constant 0 : i32
    %2 = arith.cmpi ne, %1, %c0_i32_0 : i32
    scf.if %2 {
      %c0_46 = arith.constant 0 : index
      %c0_47 = arith.constant 0 : index
      %78 = vector.load %arg3[%c0_46, %c0_47] : memref<2x32xf32, #tpu.memory_space<vmem>>, vector<2x32xf32>
      %c0_48 = arith.constant 0 : index
      %c0_49 = arith.constant 0 : index
      %79 = vector.load %arg5[%c0_48, %c0_49] : memref<2x32xf32, #tpu.memory_space<vmem>>, vector<2x32xf32>
      tpu.vector_store %arg5[%c0_48, %c0_49], %78 {strides = array<i32>} : memref<2x32xf32, #tpu.memory_space<vmem>>, vector<2x32xf32>,
    } else {
    }
    %c0 = arith.constant 0 : index
    %c0_1 = arith.constant 0 : index
    %3 = vector.load %arg2[%c0, %c0_1] : memref<32x32xf32, #tpu.memory_space<vmem>>, vector<32x32xf32>
    %c0_2 = arith.constant 0 : index
    %c0_3 = arith.constant 0 : index
    %4 = vector.load %arg5[%c0_2, %c0_3] : memref<2x32xf32, #tpu.memory_space<vmem>>, vector<2x32xf32>
    %c0_i32_4 = arith.constant 0 : i32
    %5 = arith.index_cast %c0_i32_4 : i32 to index
    %c0_5 = arith.constant 0 : index
    %c0_6 = arith.constant 0 : index
    %6 = vector.load %arg1[%5, %c0_5, %c0_6] : memref<8x2x32xf32, #tpu.memory_space<vmem>>, vector<1x2x32xf32>
    %7 = vector.shape_cast %6 : vector<1x2x32xf32> to vector<2x32xf32>
    %cst = arith.constant dense<0.000000e+00> : vector<2x32xf32>
    %8 = tpu.matmul %4, %3, %cst {dimension_numbers = #tpu.dot_dimension_numbers<[1], [0], [0], [1], [0, 0, 1, 1], [], []>} : vector<2x32xf32>, vector<32x32xf32>, vector<2x32xf32> -> vector<2x32xf32>
    %9 = arith.addf %7, %8 : vector<2x32xf32>
    %10 = arith.index_cast %c0_i32_4 : i32 to index
    %c0_7 = arith.constant 0 : index
    %c0_8 = arith.constant 0 : index
    %11 = vector.load %arg4[%10, %c0_7, %c0_8] : memref<8x2x32xf32, #tpu.memory_space<vmem>>, vector<1x2x32xf32>
    %12 = vector.shape_cast %11 : vector<1x2x32xf32> to vector<2x32xf32>
    %13 = vector.shape_cast %9 : vector<2x32xf32> to vector<1x2x32xf32>
    tpu.vector_store %arg4[%10, %c0_7, %c0_8], %13 {strides = array<i32>} : memref<8x2x32xf32, #tpu.memory_space<vmem>>, vector<1x2x32xf32>,
    %c1_i32 = arith.constant 1 : i32
    %14 = arith.index_cast %c1_i32 : i32 to index
    %c0_9 = arith.constant 0 : index
    %c0_10 = arith.constant 0 : index
    %15 = vector.load %arg1[%14, %c0_9, %c0_10] : memref<8x2x32xf32, #tpu.memory_space<vmem>>, vector<1x2x32xf32>
    %16 = vector.shape_cast %15 : vector<1x2x32xf32> to vector<2x32xf32>
    %cst_11 = arith.constant dense<0.000000e+00> : vector<2x32xf32>
    %17 = tpu.matmul %9, %3, %cst_11 {dimension_numbers = #tpu.dot_dimension_numbers<[1], [0], [0], [1], [0, 0, 1, 1], [], []>} : vector<2x32xf32>, vector<32x32xf32>, vector<2x32xf32> -> vector<2x32xf32>
    %18 = arith.addf %16, %17 : vector<2x32xf32>
    %19 = arith.index_cast %c1_i32 : i32 to index
    %c0_12 = arith.constant 0 : index
    %c0_13 = arith.constant 0 : index
    %20 = vector.load %arg4[%19, %c0_12, %c0_13] : memref<8x2x32xf32, #tpu.memory_space<vmem>>, vector<1x2x32xf32>
    %21 = vector.shape_cast %20 : vector<1x2x32xf32> to vector<2x32xf32>
    %22 = vector.shape_cast %18 : vector<2x32xf32> to vector<1x2x32xf32>
    tpu.vector_store %arg4[%19, %c0_12, %c0_13], %22 {strides = array<i32>} : memref<8x2x32xf32, #tpu.memory_space<vmem>>, vector<1x2x32xf32>,
    %c2_i32 = arith.constant 2 : i32
    %23 = arith.index_cast %c2_i32 : i32 to index
    %c0_14 = arith.constant 0 : index
    %c0_15 = arith.constant 0 : index
    %24 = vector.load %arg1[%23, %c0_14, %c0_15] : memref<8x2x32xf32, #tpu.memory_space<vmem>>, vector<1x2x32xf32>
    %25 = vector.shape_cast %24 : vector<1x2x32xf32> to vector<2x32xf32>
    %cst_16 = arith.constant dense<0.000000e+00> : vector<2x32xf32>
    %26 = tpu.matmul %18, %3, %cst_16 {dimension_numbers = #tpu.dot_dimension_numbers<[1], [0], [0], [1], [0, 0, 1, 1], [], []>} : vector<2x32xf32>, vector<32x32xf32>, vector<2x32xf32> -> vector<2x32xf32>
    %27 = arith.addf %25, %26 : vector<2x32xf32>
    %28 = arith.index_cast %c2_i32 : i32 to index
    %c0_17 = arith.constant 0 : index
    %c0_18 = arith.constant 0 : index
    %29 = vector.load %arg4[%28, %c0_17, %c0_18] : memref<8x2x32xf32, #tpu.memory_space<vmem>>, vector<1x2x32xf32>
    %30 = vector.shape_cast %29 : vector<1x2x32xf32> to vector<2x32xf32>
    %31 = vector.shape_cast %27 : vector<2x32xf32> to vector<1x2x32xf32>
    tpu.vector_store %arg4[%28, %c0_17, %c0_18], %31 {strides = array<i32>} : memref<8x2x32xf32, #tpu.memory_space<vmem>>, vector<1x2x32xf32>,
    %c3_i32 = arith.constant 3 : i32
    %32 = arith.index_cast %c3_i32 : i32 to index
    %c0_19 = arith.constant 0 : index
    %c0_20 = arith.constant 0 : index
    %33 = vector.load %arg1[%32, %c0_19, %c0_20] : memref<8x2x32xf32, #tpu.memory_space<vmem>>, vector<1x2x32xf32>
    %34 = vector.shape_cast %33 : vector<1x2x32xf32> to vector<2x32xf32>
    %cst_21 = arith.constant dense<0.000000e+00> : vector<2x32xf32>
    %35 = tpu.matmul %27, %3, %cst_21 {dimension_numbers = #tpu.dot_dimension_numbers<[1], [0], [0], [1], [0, 0, 1, 1], [], []>} : vector<2x32xf32>, vector<32x32xf32>, vector<2x32xf32> -> vector<2x32xf32>
    %36 = arith.addf %34, %35 : vector<2x32xf32>
    %37 = arith.index_cast %c3_i32 : i32 to index
    %c0_22 = arith.constant 0 : index
    %c0_23 = arith.constant 0 : index
    %38 = vector.load %arg4[%37, %c0_22, %c0_23] : memref<8x2x32xf32, #tpu.memory_space<vmem>>, vector<1x2x32xf32>
    %39 = vector.shape_cast %38 : vector<1x2x32xf32> to vector<2x32xf32>
    %40 = vector.shape_cast %36 : vector<2x32xf32> to vector<1x2x32xf32>
    tpu.vector_store %arg4[%37, %c0_22, %c0_23], %40 {strides = array<i32>} : memref<8x2x32xf32, #tpu.memory_space<vmem>>, vector<1x2x32xf32>,
    %c4_i32 = arith.constant 4 : i32
    %41 = arith.index_cast %c4_i32 : i32 to index
    %c0_24 = arith.constant 0 : index
    %c0_25 = arith.constant 0 : index
    %42 = vector.load %arg1[%41, %c0_24, %c0_25] : memref<8x2x32xf32, #tpu.memory_space<vmem>>, vector<1x2x32xf32>
    %43 = vector.shape_cast %42 : vector<1x2x32xf32> to vector<2x32xf32>
    %cst_26 = arith.constant dense<0.000000e+00> : vector<2x32xf32>
    %44 = tpu.matmul %36, %3, %cst_26 {dimension_numbers = #tpu.dot_dimension_numbers<[1], [0], [0], [1], [0, 0, 1, 1], [], []>} : vector<2x32xf32>, vector<32x32xf32>, vector<2x32xf32> -> vector<2x32xf32>
    %45 = arith.addf %43, %44 : vector<2x32xf32>
    %46 = arith.index_cast %c4_i32 : i32 to index
    %c0_27 = arith.constant 0 : index
    %c0_28 = arith.constant 0 : index
    %47 = vector.load %arg4[%46, %c0_27, %c0_28] : memref<8x2x32xf32, #tpu.memory_space<vmem>>, vector<1x2x32xf32>
    %48 = vector.shape_cast %47 : vector<1x2x32xf32> to vector<2x32xf32>
    %49 = vector.shape_cast %45 : vector<2x32xf32> to vector<1x2x32xf32>
    tpu.vector_store %arg4[%46, %c0_27, %c0_28], %49 {strides = array<i32>} : memref<8x2x32xf32, #tpu.memory_space<vmem>>, vector<1x2x32xf32>,
    %c5_i32 = arith.constant 5 : i32
    %50 = arith.index_cast %c5_i32 : i32 to index
    %c0_29 = arith.constant 0 : index
    %c0_30 = arith.constant 0 : index
    %51 = vector.load %arg1[%50, %c0_29, %c0_30] : memref<8x2x32xf32, #tpu.memory_space<vmem>>, vector<1x2x32xf32>
    %52 = vector.shape_cast %51 : vector<1x2x32xf32> to vector<2x32xf32>
    %cst_31 = arith.constant dense<0.000000e+00> : vector<2x32xf32>
    %53 = tpu.matmul %45, %3, %cst_31 {dimension_numbers = #tpu.dot_dimension_numbers<[1], [0], [0], [1], [0, 0, 1, 1], [], []>} : vector<2x32xf32>, vector<32x32xf32>, vector<2x32xf32> -> vector<2x32xf32>
    %54 = arith.addf %52, %53 : vector<2x32xf32>
    %55 = arith.index_cast %c5_i32 : i32 to index
    %c0_32 = arith.constant 0 : index
    %c0_33 = arith.constant 0 : index
    %56 = vector.load %arg4[%55, %c0_32, %c0_33] : memref<8x2x32xf32, #tpu.memory_space<vmem>>, vector<1x2x32xf32>
    %57 = vector.shape_cast %56 : vector<1x2x32xf32> to vector<2x32xf32>
    %58 = vector.shape_cast %54 : vector<2x32xf32> to vector<1x2x32xf32>
    tpu.vector_store %arg4[%55, %c0_32, %c0_33], %58 {strides = array<i32>} : memref<8x2x32xf32, #tpu.memory_space<vmem>>, vector<1x2x32xf32>,
    %c6_i32 = arith.constant 6 : i32
    %59 = arith.index_cast %c6_i32 : i32 to index
    %c0_34 = arith.constant 0 : index
    %c0_35 = arith.constant 0 : index
    %60 = vector.load %arg1[%59, %c0_34, %c0_35] : memref<8x2x32xf32, #tpu.memory_space<vmem>>, vector<1x2x32xf32>
    %61 = vector.shape_cast %60 : vector<1x2x32xf32> to vector<2x32xf32>
    %cst_36 = arith.constant dense<0.000000e+00> : vector<2x32xf32>
    %62 = tpu.matmul %54, %3, %cst_36 {dimension_numbers = #tpu.dot_dimension_numbers<[1], [0], [0], [1], [0, 0, 1, 1], [], []>} : vector<2x32xf32>, vector<32x32xf32>, vector<2x32xf32> -> vector<2x32xf32>
    %63 = arith.addf %61, %62 : vector<2x32xf32>
    %64 = arith.index_cast %c6_i32 : i32 to index
    %c0_37 = arith.constant 0 : index
    %c0_38 = arith.constant 0 : index
    %65 = vector.load %arg4[%64, %c0_37, %c0_38] : memref<8x2x32xf32, #tpu.memory_space<vmem>>, vector<1x2x32xf32>
    %66 = vector.shape_cast %65 : vector<1x2x32xf32> to vector<2x32xf32>
    %67 = vector.shape_cast %63 : vector<2x32xf32> to vector<1x2x32xf32>
    tpu.vector_store %arg4[%64, %c0_37, %c0_38], %67 {strides = array<i32>} : memref<8x2x32xf32, #tpu.memory_space<vmem>>, vector<1x2x32xf32>,
    %c7_i32 = arith.constant 7 : i32
    %68 = arith.index_cast %c7_i32 : i32 to index
    %c0_39 = arith.constant 0 : index
    %c0_40 = arith.constant 0 : index
    %69 = vector.load %arg1[%68, %c0_39, %c0_40] : memref<8x2x32xf32, #tpu.memory_space<vmem>>, vector<1x2x32xf32>
    %70 = vector.shape_cast %69 : vector<1x2x32xf32> to vector<2x32xf32>
    %cst_41 = arith.constant dense<0.000000e+00> : vector<2x32xf32>
    %71 = tpu.matmul %63, %3, %cst_41 {dimension_numbers = #tpu.dot_dimension_numbers<[1], [0], [0], [1], [0, 0, 1, 1], [], []>} : vector<2x32xf32>, vector<32x32xf32>, vector<2x32xf32> -> vector<2x32xf32>
    %72 = arith.addf %70, %71 : vector<2x32xf32>
    %73 = arith.index_cast %c7_i32 : i32 to index
    %c0_42 = arith.constant 0 : index
    %c0_43 = arith.constant 0 : index
    %74 = vector.load %arg4[%73, %c0_42, %c0_43] : memref<8x2x32xf32, #tpu.memory_space<vmem>>, vector<1x2x32xf32>
    %75 = vector.shape_cast %74 : vector<1x2x32xf32> to vector<2x32xf32>
    %76 = vector.shape_cast %72 : vector<2x32xf32> to vector<1x2x32xf32>
    tpu.vector_store %arg4[%73, %c0_42, %c0_43], %76 {strides = array<i32>} : memref<8x2x32xf32, #tpu.memory_space<vmem>>, vector<1x2x32xf32>,
    %c8_i32 = arith.constant 8 : i32
    %c0_44 = arith.constant 0 : index
    %c0_45 = arith.constant 0 : index
    %77 = vector.load %arg5[%c0_44, %c0_45] : memref<2x32xf32, #tpu.memory_space<vmem>>, vector<2x32xf32>
    tpu.vector_store %arg5[%c0_44, %c0_45], %72 {strides = array<i32>} : memref<2x32xf32, #tpu.memory_space<vmem>>, vector<2x32xf32>,
    return
  }
  func.func @transform_0(%arg0: i32) -> (i32, i32, i32) {
    %c0_i32 = arith.constant 0 : i32
    %c0_i32_0 = arith.constant 0 : i32
    %c0_i32_1 = arith.constant 0 : i32
    return %arg0, %c0_i32, %c0_i32_0 : i32, i32, i32
  }
  func.func @transform_1(%arg0: i32) -> (i32, i32) {
    %c0_i32 = arith.constant 0 : i32
    %c0_i32_0 = arith.constant 0 : i32
    %c0_i32_1 = arith.constant 0 : i32
    return %c0_i32, %c0_i32_0 : i32, i32
  }
  func.func @transform_2(%arg0: i32) -> (i32, i32) {
    %c0_i32 = arith.constant 0 : i32
    %c0_i32_0 = arith.constant 0 : i32
    %c0_i32_1 = arith.constant 0 : i32
    return %c0_i32, %c0_i32_0 : i32, i32
  }
  func.func @transform_3(%arg0: i32) -> (i32, i32, i32) {
    %c0_i32 = arith.constant 0 : i32
    %c0_i32_0 = arith.constant 0 : i32
    %c0_i32_1 = arith.constant 0 : i32
    return %arg0, %c0_i32, %c0_i32_0 : i32, i32, i32
  }
  func.func @transform_4(%arg0: i32) -> (i32, i32) {
    %c0_i32 = arith.constant 0 : i32
    %c0_i32_0 = arith.constant 0 : i32
    %c0_i32_1 = arith.constant 0 : i32
    return %c0_i32, %c0_i32_0 : i32, i32
  }
}

module attributes {stable_mosaic.version = 11 : i64} {
  func.func @_in_proj_kernel(%arg0: i32, %arg1: memref<16x16xf32, #tpu.memory_space<vmem>>, %arg2: memref<16x32xf32, #tpu.memory_space<vmem>>, %arg3: memref<16x16xf32, #tpu.memory_space<vmem>>, %arg4: memref<1x32xf32, #tpu.memory_space<vmem>>, %arg5: memref<1x16xf32, #tpu.memory_space<vmem>>, %arg6: memref<16x32xf32, #tpu.memory_space<vmem>>, %arg7: memref<16x16xf32, #tpu.memory_space<vmem>>) attributes {dimension_semantics = [#tpu.dimension_semantics<parallel>], iteration_bounds = array<i64: 1>, scalar_prefetch = 0 : i64, scratch_operands = 0 : i64, tpu.core_type = #tpu.core_type<tc>, window_params = [{transform_indices = @transform_0, window_bounds = array<i64: 16, 16>}, {pipeline_mode = #tpu.pipeline_mode<synchronous>, transform_indices = @transform_1, window_bounds = array<i64: 16, 32>}, {pipeline_mode = #tpu.pipeline_mode<synchronous>, transform_indices = @transform_2, window_bounds = array<i64: 16, 16>}, {pipeline_mode = #tpu.pipeline_mode<synchronous>, transform_indices = @transform_3, window_bounds = array<i64: 1, 32>}, {pipeline_mode = #tpu.pipeline_mode<synchronous>, transform_indices = @transform_4, window_bounds = array<i64: 1, 16>}, {transform_indices = @transform_5, window_bounds = array<i64: 16, 32>}, {transform_indices = @transform_6, window_bounds = array<i64: 16, 16>}]} {
    %c0 = arith.constant 0 : index
    %c0_0 = arith.constant 0 : index
    %0 = vector.load %arg1[%c0, %c0_0] : memref<16x16xf32, #tpu.memory_space<vmem>>, vector<16x16xf32>
    %c0_1 = arith.constant 0 : index
    %c0_2 = arith.constant 0 : index
    %1 = vector.load %arg2[%c0_1, %c0_2] : memref<16x32xf32, #tpu.memory_space<vmem>>, vector<16x32xf32>
    %cst = arith.constant dense<0.000000e+00> : vector<16x32xf32>
    %2 = tpu.matmul %0, %1, %cst {dimension_numbers = #tpu.dot_dimension_numbers<[1], [0], [0], [1], [0, 0, 1, 1], [], []>} : vector<16x16xf32>, vector<16x32xf32>, vector<16x32xf32> -> vector<16x32xf32>
    %c0_3 = arith.constant 0 : index
    %c0_4 = arith.constant 0 : index
    %3 = vector.load %arg4[%c0_3, %c0_4] : memref<1x32xf32, #tpu.memory_space<vmem>>, vector<1x32xf32>
    %4 = vector.broadcast %3 : vector<1x32xf32> to vector<16x32xf32>
    %5 = arith.addf %2, %4 : vector<16x32xf32>
    %c0_5 = arith.constant 0 : index
    %c0_6 = arith.constant 0 : index
    %6 = vector.load %arg6[%c0_5, %c0_6] : memref<16x32xf32, #tpu.memory_space<vmem>>, vector<16x32xf32>
    tpu.vector_store %arg6[%c0_5, %c0_6], %5 {strides = array<i32>} : memref<16x32xf32, #tpu.memory_space<vmem>>, vector<16x32xf32>,
    %c0_7 = arith.constant 0 : index
    %c0_8 = arith.constant 0 : index
    %7 = vector.load %arg3[%c0_7, %c0_8] : memref<16x16xf32, #tpu.memory_space<vmem>>, vector<16x16xf32>
    %cst_9 = arith.constant dense<0.000000e+00> : vector<16x16xf32>
    %8 = tpu.matmul %0, %7, %cst_9 {dimension_numbers = #tpu.dot_dimension_numbers<[1], [0], [0], [1], [0, 0, 1, 1], [], []>} : vector<16x16xf32>, vector<16x16xf32>, vector<16x16xf32> -> vector<16x16xf32>
    %c0_10 = arith.constant 0 : index
    %c0_11 = arith.constant 0 : index
    %9 = vector.load %arg5[%c0_10, %c0_11] : memref<1x16xf32, #tpu.memory_space<vmem>>, vector<1x16xf32>
    %10 = vector.broadcast %9 : vector<1x16xf32> to vector<16x16xf32>
    %11 = arith.addf %8, %10 : vector<16x16xf32>
    %c0_12 = arith.constant 0 : index
    %c0_13 = arith.constant 0 : index
    %12 = vector.load %arg7[%c0_12, %c0_13] : memref<16x16xf32, #tpu.memory_space<vmem>>, vector<16x16xf32>
    tpu.vector_store %arg7[%c0_12, %c0_13], %11 {strides = array<i32>} : memref<16x16xf32, #tpu.memory_space<vmem>>, vector<16x16xf32>,
    return
  }
  func.func @transform_0(%arg0: i32) -> (i32, i32) {
    %c0_i32 = arith.constant 0 : i32
    %c0_i32_0 = arith.constant 0 : i32
    return %arg0, %c0_i32 : i32, i32
  }
  func.func @transform_1(%arg0: i32) -> (i32, i32) {
    %c0_i32 = arith.constant 0 : i32
    %c0_i32_0 = arith.constant 0 : i32
    %c0_i32_1 = arith.constant 0 : i32
    return %c0_i32, %c0_i32_0 : i32, i32
  }
  func.func @transform_2(%arg0: i32) -> (i32, i32) {
    %c0_i32 = arith.constant 0 : i32
    %c0_i32_0 = arith.constant 0 : i32
    %c0_i32_1 = arith.constant 0 : i32
    return %c0_i32, %c0_i32_0 : i32, i32
  }
  func.func @transform_3(%arg0: i32) -> (i32, i32) {
    %c0_i32 = arith.constant 0 : i32
    %c0_i32_0 = arith.constant 0 : i32
    %c0_i32_1 = arith.constant 0 : i32
    return %c0_i32, %c0_i32_0 : i32, i32
  }
  func.func @transform_4(%arg0: i32) -> (i32, i32) {
    %c0_i32 = arith.constant 0 : i32
    %c0_i32_0 = arith.constant 0 : i32
    %c0_i32_1 = arith.constant 0 : i32
    return %c0_i32, %c0_i32_0 : i32, i32
  }
  func.func @transform_5(%arg0: i32) -> (i32, i32) {
    %c0_i32 = arith.constant 0 : i32
    %c0_i32_0 = arith.constant 0 : i32
    return %arg0, %c0_i32 : i32, i32
  }
  func.func @transform_6(%arg0: i32) -> (i32, i32) {
    %c0_i32 = arith.constant 0 : i32
    %c0_i32_0 = arith.constant 0 : i32
    return %arg0, %c0_i32 : i32, i32
  }
}

module attributes {stable_mosaic.version = 11 : i64} {
  func.func @_out_proj_kernel(%arg0: i32, %arg1: memref<16x16xf32, #tpu.memory_space<vmem>>, %arg2: memref<16x32xf32, #tpu.memory_space<vmem>>, %arg3: memref<16x32xf32, #tpu.memory_space<vmem>>, %arg4: memref<32x16xf32, #tpu.memory_space<vmem>>, %arg5: memref<32x16xf32, #tpu.memory_space<vmem>>, %arg6: memref<16x16xf32, #tpu.memory_space<vmem>>, %arg7: memref<1x16xf32, #tpu.memory_space<vmem>>, %arg8: memref<16x16xf32, #tpu.memory_space<vmem>>) attributes {dimension_semantics = [#tpu.dimension_semantics<parallel>], iteration_bounds = array<i64: 1>, scalar_prefetch = 0 : i64, scratch_operands = 0 : i64, tpu.core_type = #tpu.core_type<tc>, window_params = [{transform_indices = @transform_0, window_bounds = array<i64: 16, 16>}, {transform_indices = @transform_1, window_bounds = array<i64: 16, 32>}, {transform_indices = @transform_2, window_bounds = array<i64: 16, 32>}, {pipeline_mode = #tpu.pipeline_mode<synchronous>, transform_indices = @transform_3, window_bounds = array<i64: 32, 16>}, {pipeline_mode = #tpu.pipeline_mode<synchronous>, transform_indices = @transform_4, window_bounds = array<i64: 32, 16>}, {pipeline_mode = #tpu.pipeline_mode<synchronous>, transform_indices = @transform_5, window_bounds = array<i64: 16, 16>}, {pipeline_mode = #tpu.pipeline_mode<synchronous>, transform_indices = @transform_6, window_bounds = array<i64: 1, 16>}, {transform_indices = @transform_7, window_bounds = array<i64: 16, 16>}]} {
    %c0 = arith.constant 0 : index
    %c0_0 = arith.constant 0 : index
    %0 = vector.load %arg1[%c0, %c0_0] : memref<16x16xf32, #tpu.memory_space<vmem>>, vector<16x16xf32>
    %c0_1 = arith.constant 0 : index
    %c0_2 = arith.constant 0 : index
    %1 = vector.load %arg2[%c0_1, %c0_2] : memref<16x32xf32, #tpu.memory_space<vmem>>, vector<16x32xf32>
    %c0_3 = arith.constant 0 : index
    %c0_4 = arith.constant 0 : index
    %2 = vector.load %arg4[%c0_3, %c0_4] : memref<32x16xf32, #tpu.memory_space<vmem>>, vector<32x16xf32>
    %cst = arith.constant dense<0.000000e+00> : vector<16x16xf32>
    %3 = tpu.matmul %1, %2, %cst {dimension_numbers = #tpu.dot_dimension_numbers<[1], [0], [0], [1], [0, 0, 1, 1], [], []>} : vector<16x32xf32>, vector<32x16xf32>, vector<16x16xf32> -> vector<16x16xf32>
    %4 = arith.addf %0, %3 : vector<16x16xf32>
    %c0_5 = arith.constant 0 : index
    %c0_6 = arith.constant 0 : index
    %5 = vector.load %arg3[%c0_5, %c0_6] : memref<16x32xf32, #tpu.memory_space<vmem>>, vector<16x32xf32>
    %c0_7 = arith.constant 0 : index
    %c0_8 = arith.constant 0 : index
    %6 = vector.load %arg5[%c0_7, %c0_8] : memref<32x16xf32, #tpu.memory_space<vmem>>, vector<32x16xf32>
    %cst_9 = arith.constant dense<0.000000e+00> : vector<16x16xf32>
    %7 = tpu.matmul %5, %6, %cst_9 {dimension_numbers = #tpu.dot_dimension_numbers<[1], [0], [0], [1], [0, 0, 1, 1], [], []>} : vector<16x32xf32>, vector<32x16xf32>, vector<16x16xf32> -> vector<16x16xf32>
    %c0_10 = arith.constant 0 : index
    %c0_11 = arith.constant 0 : index
    %8 = vector.load %arg6[%c0_10, %c0_11] : memref<16x16xf32, #tpu.memory_space<vmem>>, vector<16x16xf32>
    %cst_12 = arith.constant dense<0.000000e+00> : vector<16x16xf32>
    %9 = tpu.matmul %4, %8, %cst_12 {dimension_numbers = #tpu.dot_dimension_numbers<[1], [0], [0], [1], [0, 0, 1, 1], [], []>} : vector<16x16xf32>, vector<16x16xf32>, vector<16x16xf32> -> vector<16x16xf32>
    %10 = arith.addf %7, %9 : vector<16x16xf32>
    %c0_13 = arith.constant 0 : index
    %c0_14 = arith.constant 0 : index
    %11 = vector.load %arg7[%c0_13, %c0_14] : memref<1x16xf32, #tpu.memory_space<vmem>>, vector<1x16xf32>
    %12 = vector.broadcast %11 : vector<1x16xf32> to vector<16x16xf32>
    %13 = arith.addf %10, %12 : vector<16x16xf32>
    %cst_15 = arith.constant dense<0xFF800000> : vector<16xf32>
    %14 = vector.multi_reduction <maximumf>, %13, %cst_15 [1] : vector<16x16xf32> to vector<16xf32>
    %15 = vector.shape_cast %14 : vector<16xf32> to vector<16x1xf32>
    %16 = vector.broadcast %15 : vector<16x1xf32> to vector<16x16xf32>
    %17 = arith.subf %13, %16 : vector<16x16xf32>
    %18 = math.exp %17 : vector<16x16xf32>
    %cst_16 = arith.constant dense<0.000000e+00> : vector<16xf32>
    %19 = vector.multi_reduction <add>, %18, %cst_16 [1] : vector<16x16xf32> to vector<16xf32>
    %20 = vector.shape_cast %19 : vector<16xf32> to vector<16x1xf32>
    %21 = math.log %20 : vector<16x1xf32>
    %22 = vector.broadcast %21 : vector<16x1xf32> to vector<16x16xf32>
    %23 = arith.subf %17, %22 : vector<16x16xf32>
    %c0_17 = arith.constant 0 : index
    %c0_18 = arith.constant 0 : index
    %24 = vector.load %arg8[%c0_17, %c0_18] : memref<16x16xf32, #tpu.memory_space<vmem>>, vector<16x16xf32>
    tpu.vector_store %arg8[%c0_17, %c0_18], %23 {strides = array<i32>} : memref<16x16xf32, #tpu.memory_space<vmem>>, vector<16x16xf32>,
    return
  }
  func.func @transform_0(%arg0: i32) -> (i32, i32) {
    %c0_i32 = arith.constant 0 : i32
    %c0_i32_0 = arith.constant 0 : i32
    return %arg0, %c0_i32 : i32, i32
  }
  func.func @transform_1(%arg0: i32) -> (i32, i32) {
    %c0_i32 = arith.constant 0 : i32
    %c0_i32_0 = arith.constant 0 : i32
    return %arg0, %c0_i32 : i32, i32
  }
  func.func @transform_2(%arg0: i32) -> (i32, i32) {
    %c0_i32 = arith.constant 0 : i32
    %c0_i32_0 = arith.constant 0 : i32
    return %arg0, %c0_i32 : i32, i32
  }
  func.func @transform_3(%arg0: i32) -> (i32, i32) {
    %c0_i32 = arith.constant 0 : i32
    %c0_i32_0 = arith.constant 0 : i32
    %c0_i32_1 = arith.constant 0 : i32
    return %c0_i32, %c0_i32_0 : i32, i32
  }
  func.func @transform_4(%arg0: i32) -> (i32, i32) {
    %c0_i32 = arith.constant 0 : i32
    %c0_i32_0 = arith.constant 0 : i32
    %c0_i32_1 = arith.constant 0 : i32
    return %c0_i32, %c0_i32_0 : i32, i32
  }
  func.func @transform_5(%arg0: i32) -> (i32, i32) {
    %c0_i32 = arith.constant 0 : i32
    %c0_i32_0 = arith.constant 0 : i32
    %c0_i32_1 = arith.constant 0 : i32
    return %c0_i32, %c0_i32_0 : i32, i32
  }
  func.func @transform_6(%arg0: i32) -> (i32, i32) {
    %c0_i32 = arith.constant 0 : i32
    %c0_i32_0 = arith.constant 0 : i32
    %c0_i32_1 = arith.constant 0 : i32
    return %c0_i32, %c0_i32_0 : i32, i32
  }
  func.func @transform_7(%arg0: i32) -> (i32, i32) {
    %c0_i32 = arith.constant 0 : i32
    %c0_i32_0 = arith.constant 0 : i32
    return %arg0, %c0_i32 : i32, i32
  }
}

</mosaic_0001>

<llo_original>
// kernel: rnn_sequence_forward.3
$region0: #{rnn_sequence_forward.3}
  #allocation0 [shape = 'u32[]', space=smem, size = 0x4, offset = 0x4, fixed_abs, tag = 'smem constant byte address 0x4 - core index']
  #allocation1 [shape = 'u32[144,128]{1,0:T(1,128)}', space=vmem, size = 0x12000, scoped, tag = 'internal scratch']
  %s0 = inlined_call_operand.vmem [shape: f32[16,16], index: 0, kind: input, shape index: {}]
  %s1 = inlined_call_operand.vmem [shape: f32[16,32], index: 1, kind: input, shape index: {}]
  %s2 = inlined_call_operand.vmem [shape: f32[16,16], index: 2, kind: input, shape index: {}]
  %s3 = inlined_call_operand.vmem [shape: f32[1,32], index: 3, kind: input, shape index: {}]
  %s4 = inlined_call_operand.vmem [shape: f32[1,16], index: 4, kind: input, shape index: {}]
  %s5 = inlined_call_operand.vmem [shape: f32[16,32], index: 5, kind: output, shape index: {0}]
  %s6 = inlined_call_operand.vmem [shape: f32[16,16], index: 6, kind: output, shape index: {1}]
  %7 = xla_tuple %s5, %s6
  %s8 = sld [smem:[#allocation0]]
  $region38: #{rnn_sequence_forward.3} parent=0
    _
  %s10 = ssub.s32 1, %s8
  %s11 = scalar_select 0, %s10, %s8
  // Predicated region
  $region2: #{rnn_sequence_forward.3} parent=0 // pred_check
    _
  $region3: #{rnn_sequence_forward.3} parent=0 // pred_check_branch
    %13 = sbr.rel (0) target = $region5
  $region4: #{rnn_sequence_forward.3} parent=0 // pred_region
    _
  $region5: #{rnn_sequence_forward.3} parent=0 // pred_fallthru
    _
  // Predicated region
  $region6: #{rnn_sequence_forward.3} parent=0 // pred_check
    _
  $region7: #{rnn_sequence_forward.3} parent=0 // pred_check_branch
    %15 = sbr.rel (0) target = $region9
  $region8: #{rnn_sequence_forward.3} parent=0 // pred_region
    _
  $region9: #{rnn_sequence_forward.3} parent=0 // pred_fallthru
    _
  // Predicated region
  $region10: #{rnn_sequence_forward.3} parent=0 // pred_check
    _
  $region11: #{rnn_sequence_forward.3} parent=0 // pred_check_branch
    %17 = sbr.rel (0) target = $region13
  $region12: #{rnn_sequence_forward.3} parent=0 // pred_region
    _
  $region13: #{rnn_sequence_forward.3} parent=0 // pred_fallthru
    _
  // Predicated region
  $region14: #{rnn_sequence_forward.3} parent=0 // pred_check
    _
  $region15: #{rnn_sequence_forward.3} parent=0 // pred_check_branch
    %19 = sbr.rel (0) target = $region17
  $region16: #{rnn_sequence_forward.3} parent=0 // pred_region
    _
  $region17: #{rnn_sequence_forward.3} parent=0 // pred_fallthru
    _
  // Predicated region
  $region18: #{rnn_sequence_forward.3} parent=0 // pred_check
    _
  $region19: #{rnn_sequence_forward.3} parent=0 // pred_check_branch
    %21 = sbr.rel (0) target = $region21
  $region20: #{rnn_sequence_forward.3} parent=0 // pred_region
    _
  $region21: #{rnn_sequence_forward.3} parent=0 // pred_fallthru
    _
  %v22 = vld [vmem:[%s0] sm:$0xff]
  %v23 = vld [vmem:[%s0 + $0x8] sm:$0xff]
  %v24 = vld [vmem:[%s1] sm:$0xff]
  %v25 = vld [vmem:[%s1 + $0x8] sm:$0xff]
  %v26 = vld [vmem:[%s3] sm:$0x1]
  %v28 = vlaneseq
  %v29 = vshrl.u32 %v28, 7
  %v30 = vsub.s32 0, %v29
  %v31 = vrot.slane %v26, %v30
  %vm33 = vcmask 130048
  %v35 = vsel %vm33, %v22, 0
  %v38 = vsel %vm33, %v23, 0
  %40 = vmatprep.subr.mxu0 0.0
  %41 = vmatpush1.msra.mxu0 0.0
  %42 = vmatprep.subr.mxu0 0.0
  %43 = vmatpush1.msra.mxu0 0.0
  %44 = vmatprep.subr.mxu0 0.0
  %45 = vmatpush1.msra.mxu0 0.0
  %46 = vmatprep.subr.mxu0 0.0
  %47 = vmatpush1.msra.mxu0 0.0
  %48 = vmatprep.subr.mxu0 0.0
  %49 = vmatpush1.msra.mxu0 0.0
  %50 = vmatprep.subr.mxu0 0.0
  %51 = vmatpush1.msra.mxu0 0.0
  %52 = vmatprep.subr.mxu0 0.0
  %53 = vmatpush1.msra.mxu0 0.0
  %54 = vmatprep.subr.mxu0 0.0
  %55 = vmatpush1.msra.mxu0 0.0
  %56 = vmatprep.subr.mxu0 0.0
  %57 = vmatpush1.msra.mxu0 0.0
  %58 = vmatprep.subr.mxu0 0.0
  %59 = vmatpush1.msra.mxu0 0.0
  %60 = vmatprep.subr.mxu0 0.0
  %61 = vmatpush1.msra.mxu0 0.0
  %62 = vmatprep.subr.mxu0 0.0
  %63 = vmatpush1.msra.mxu0 0.0
  %64 = vmatprep.subr.mxu0 0.0
  %65 = vmatpush1.msra.mxu0 0.0
  %66 = vmatprep.subr.mxu0 0.0
  %67 = vmatpush1.msra.mxu0 0.0
  %68 = vmatprep.subr.mxu0 0.0
  %69 = vmatpush1.msra.mxu0 %v25
  %70 = vmatprep.subr.mxu0 0.0
  %71 = vmatpush1.msra.mxu0 %v24
  %72 = vmatprep.subr.mxu0 0.0
  %73 = vmatpush2.msra.mxu0 0.0
  %74 = vmatprep.subr.mxu0 0.0
  %75 = vmatpush2.msra.mxu0 0.0
  %76 = vmatprep.subr.mxu0 0.0
  %77 = vmatpush2.msra.mxu0 0.0
  %78 = vmatprep.subr.mxu0 0.0
  %79 = vmatpush2.msra.mxu0 0.0
  %80 = vmatprep.subr.mxu0 0.0
  %81 = vmatpush2.msra.mxu0 0.0
  %82 = vmatprep.subr.mxu0 0.0
  %83 = vmatpush2.msra.mxu0 0.0
  %84 = vmatprep.subr.mxu0 0.0
  %85 = vmatpush2.msra.mxu0 0.0
  %86 = vmatprep.subr.mxu0 0.0
  %87 = vmatpush2.msra.mxu0 0.0
  %88 = vmatprep.subr.mxu0 0.0
  %89 = vmatpush2.msra.mxu0 0.0
  %90 = vmatprep.subr.mxu0 0.0
  %91 = vmatpush2.msra.mxu0 0.0
  %92 = vmatprep.subr.mxu0 0.0
  %93 = vmatpush2.msra.mxu0 0.0
  %94 = vmatprep.subr.mxu0 0.0
  %95 = vmatpush2.msra.mxu0 0.0
  %96 = vmatprep.subr.mxu0 0.0
  %97 = vmatpush2.msra.mxu0 0.0
  %98 = vmatprep.subr.mxu0 0.0
  %99 = vmatpush2.msra.mxu0 0.0
  %100 = vmatprep.subr.mxu0 0.0
  %101 = vmatpush2.msra.mxu0 0.0
  %102 = vmatprep.subr.mxu0 0.0
  %103 = vmatpush2.msra.mxu0 0.0
  %104 = vmatprep.mubr.f32.mxu0 0.0
  %105 = vmatmul.mubr.f32.gmra.mxu0 %v35
  %v106 = vpop.f32.mrf.mxu0
  %v107 = vadd.f32 %v31, %v106
  %v108 = vpop.f32.mrf.mxu0
  %109 = vmatprep.mubr.f32.mxu0 0.0
  %110 = vmatmul.mubr.f32.gmra.mxu0 %v38
  %v111 = vpop.f32.mrf.mxu0
  %v112 = vadd.f32 %v31, %v111
  %v113 = vpop.f32.mrf.mxu0
  %114 = vdwg.mxu0
  %vm115 = vcmask 261120
  %116 = vst.msk [vmem:[%s5] sm:$0xff] %vm115, %v107
  %117 = vst.msk [vmem:[%s5 + $0x8] sm:$0xff] %vm115, %v112
  %v118 = vld [vmem:[%s2] sm:$0xff]
  %v119 = vld [vmem:[%s2 + $0x8] sm:$0xff]
  %v120 = vld [vmem:[%s4] sm:$0x1]
  %v122 = vlaneseq
  %v123 = vshrl.u32 %v122, 7
  %v124 = vsub.s32 0, %v123
  %v125 = vrot.slane %v120, %v124
  %127 = vmatprep.subr.mxu0 0.0
  %128 = vmatpush1.msra.mxu0 0.0
  %129 = vmatprep.subr.mxu0 0.0
  %130 = vmatpush1.msra.mxu0 0.0
  %131 = vmatprep.subr.mxu0 0.0
  %132 = vmatpush1.msra.mxu0 0.0
  %133 = vmatprep.subr.mxu0 0.0
  %134 = vmatpush1.msra.mxu0 0.0
  %135 = vmatprep.subr.mxu0 0.0
  %136 = vmatpush1.msra.mxu0 0.0
  %137 = vmatprep.subr.mxu0 0.0
  %138 = vmatpush1.msra.mxu0 0.0
  %139 = vmatprep.subr.mxu0 0.0
  %140 = vmatpush1.msra.mxu0 0.0
  %141 = vmatprep.subr.mxu0 0.0
  %142 = vmatpush1.msra.mxu0 0.0
  %143 = vmatprep.subr.mxu0 0.0
  %144 = vmatpush1.msra.mxu0 0.0
  %145 = vmatprep.subr.mxu0 0.0
  %146 = vmatpush1.msra.mxu0 0.0
  %147 = vmatprep.subr.mxu0 0.0
  %148 = vmatpush1.msra.mxu0 0.0
  %149 = vmatprep.subr.mxu0 0.0
  %150 = vmatpush1.msra.mxu0 0.0
  %151 = vmatprep.subr.mxu0 0.0
  %152 = vmatpush1.msra.mxu0 0.0
  %153 = vmatprep.subr.mxu0 0.0
  %154 = vmatpush1.msra.mxu0 0.0
  %155 = vmatprep.subr.mxu0 0.0
  %156 = vmatpush1.msra.mxu0 %v119
  %157 = vmatprep.subr.mxu0 0.0
  %158 = vmatpush1.msra.mxu0 %v118
  %159 = vmatprep.subr.mxu0 0.0
  %160 = vmatpush2.msra.mxu0 0.0
  %161 = vmatprep.subr.mxu0 0.0
  %162 = vmatpush2.msra.mxu0 0.0
  %163 = vmatprep.subr.mxu0 0.0
  %164 = vmatpush2.msra.mxu0 0.0
  %165 = vmatprep.subr.mxu0 0.0
  %166 = vmatpush2.msra.mxu0 0.0
  %167 = vmatprep.subr.mxu0 0.0
  %168 = vmatpush2.msra.mxu0 0.0
  %169 = vmatprep.subr.mxu0 0.0
  %170 = vmatpush2.msra.mxu0 0.0
  %171 = vmatprep.subr.mxu0 0.0
  %172 = vmatpush2.msra.mxu0 0.0
  %173 = vmatprep.subr.mxu0 0.0
  %174 = vmatpush2.msra.mxu0 0.0
  %175 = vmatprep.subr.mxu0 0.0
  %176 = vmatpush2.msra.mxu0 0.0
  %177 = vmatprep.subr.mxu0 0.0
  %178 = vmatpush2.msra.mxu0 0.0
  %179 = vmatprep.subr.mxu0 0.0
  %180 = vmatpush2.msra.mxu0 0.0
  %181 = vmatprep.subr.mxu0 0.0
  %182 = vmatpush2.msra.mxu0 0.0
  %183 = vmatprep.subr.mxu0 0.0
  %184 = vmatpush2.msra.mxu0 0.0
  %185 = vmatprep.subr.mxu0 0.0
  %186 = vmatpush2.msra.mxu0 0.0
  %187 = vmatprep.subr.mxu0 0.0
  %188 = vmatpush2.msra.mxu0 0.0
  %189 = vmatprep.subr.mxu0 0.0
  %190 = vmatpush2.msra.mxu0 0.0
  %191 = vmatprep.mubr.f32.mxu0 0.0
  %192 = vmatmul.mubr.f32.gmra.mxu0 %v35
  %v193 = vpop.f32.mrf.mxu0
  %v194 = vadd.f32 %v125, %v193
  %v195 = vpop.f32.mrf.mxu0
  %196 = vmatprep.mubr.f32.mxu0 0.0
  %197 = vmatmul.mubr.f32.gmra.mxu0 %v38
  %v198 = vpop.f32.mrf.mxu0
  %v199 = vadd.f32 %v125, %v198
  %v200 = vpop.f32.mrf.mxu0
  %201 = vdwg.mxu0
  %202 = vst.msk [vmem:[%s6] sm:$0xff] %vm33, %v194
  %203 = vst.msk [vmem:[%s6 + $0x8] sm:$0xff] %vm33, %v199
  // Predicated region
  $region22: #{rnn_sequence_forward.3} parent=0 // pred_check
    _
  $region23: #{rnn_sequence_forward.3} parent=0 // pred_check_branch
    %205 = sbr.rel (0) target = $region25
  $region24: #{rnn_sequence_forward.3} parent=0 // pred_region
    _
  $region25: #{rnn_sequence_forward.3} parent=0 // pred_fallthru
    _
  // Predicated region
  $region26: #{rnn_sequence_forward.3} parent=0 // pred_check
    _
  $region27: #{rnn_sequence_forward.3} parent=0 // pred_check_branch
    %207 = sbr.rel (0) target = $region29
  $region28: #{rnn_sequence_forward.3} parent=0 // pred_region
    _
  $region29: #{rnn_sequence_forward.3} parent=0 // pred_fallthru
    _
  // Predicated region
  $region30: #{rnn_sequence_forward.3} parent=0 // pred_check
    _
  $region31: #{rnn_sequence_forward.3} parent=0 // pred_check_branch
    %209 = sbr.rel (0) target = $region33
  $region32: #{rnn_sequence_forward.3} parent=0 // pred_region
    _
  $region33: #{rnn_sequence_forward.3} parent=0 // pred_fallthru
    _
  // Predicated region
  $region34: #{rnn_sequence_forward.3} parent=0 // pred_check
    _
  $region35: #{rnn_sequence_forward.3} parent=0 // pred_check_branch
    %211 = sbr.rel (0) target = $region37
  $region36: #{rnn_sequence_forward.3} parent=0 // pred_region
    _
  $region37: #{rnn_sequence_forward.3} parent=0 // pred_fallthru
    _

// kernel: rnn_sequence_forward.4
$region0: #{rnn_sequence_forward.4}
  #allocation0 [shape = 'u32[]', space=smem, size = 0x4, offset = 0x4, fixed_abs, tag = 'smem constant byte address 0x4 - core index']
  #allocation1 [shape = 'u32[144,128]{1,0:T(1,128)}', space=vmem, size = 0x12000, scoped, tag = 'internal scratch']
  %s0 = inlined_call_operand.vmem [shape: f32[8,2,32], index: 0, kind: input, shape index: {}]
  %s1 = inlined_call_operand.vmem [shape: f32[32,32], index: 1, kind: input, shape index: {}]
  %s2 = inlined_call_operand.vmem [shape: f32[2,32], index: 2, kind: input, shape index: {}]
  %s3 = inlined_call_operand.vmem [shape: f32[8,2,32], index: 3, kind: output, shape index: {0}]
  %s4 = inlined_call_operand.hbm [shape: f32[2,32], index: 4, kind: output, shape index: {1}]
  %5 = xla_tuple %s3, %s4
  %s6 = sld [smem:[#allocation0]]
  $region34: #{rnn_sequence_forward.4} parent=0
    _
  %s8 = ssub.s32 1, %s6
  %s9 = scalar_select 0, %s8, %s6
  $region1: #{rnn_sequence_forward.4} parent=0
    #allocation2 [shape = 'u8[1024]{0}', space=vmem, size = 0x400, scoped, tag = 'output window, operand 1, single buffered']
    #allocation3 [shape = 's32[1]{0}', space=sflag, size = 0x4, scoped, tag = 'scoped memory for rnn_sequence_forward.4']
    %10 = vsyncpa [#allocation3], 0
    // Predicated region
    $region2: #{rnn_sequence_forward.4} parent=1 // pred_check
      _
    $region3: #{rnn_sequence_forward.4} parent=1 // pred_check_branch
      %12 = sbr.rel (0) target = $region5
    $region4: #{rnn_sequence_forward.4} parent=1 // pred_region
      _
    $region5: #{rnn_sequence_forward.4} parent=1 // pred_fallthru
      _
    // Predicated region
    $region6: #{rnn_sequence_forward.4} parent=1 // pred_check
      _
    $region7: #{rnn_sequence_forward.4} parent=1 // pred_check_branch
      %14 = sbr.rel (0) target = $region9
    $region8: #{rnn_sequence_forward.4} parent=1 // pred_region
      _
    $region9: #{rnn_sequence_forward.4} parent=1 // pred_fallthru
      _
    // Predicated region
    $region10: #{rnn_sequence_forward.4} parent=1 // pred_check
      _
    $region11: #{rnn_sequence_forward.4} parent=1 // pred_check_branch
      %16 = sbr.rel (0) target = $region13
    $region12: #{rnn_sequence_forward.4} parent=1 // pred_region
      _
    $region13: #{rnn_sequence_forward.4} parent=1 // pred_fallthru
      _
    %p17 = scmp.eq.s32.totalorder 0, 0
    // Predicated region
    $region14: #{rnn_sequence_forward.4} parent=1 // pred_check
      %p18 = pneg %p17
    $region15: #{rnn_sequence_forward.4} parent=1 // pred_check_branch
      %20 = sbr.rel (%p18) target = $region17
    $region16: #{rnn_sequence_forward.4} parent=1 // pred_region
      %v21 = vld [vmem:[%s2] sm:$0x3]
      %vm22 = vcmask 254976
      %23 = vst.msk [vmem:[#allocation2] sm:$0x3] %vm22, %v21
    $region17: #{rnn_sequence_forward.4} parent=1 // pred_fallthru
      _
    %v24 = vld [vmem:[%s1] sm:$0xff]
    %v25 = vld [vmem:[%s1 + $0x8] sm:$0xff]
    %v26 = vld [vmem:[%s1 + $0x10] sm:$0xff]
    %v27 = vld [vmem:[%s1 + $0x18] sm:$0xff]
    %v28 = vld [vmem:[#allocation2] sm:$0x3]
    %v29 = vld [vmem:[%s0] sm:$0x3]
    %vm30 = vcmask 261120
    %v32 = vsel %vm30, %v28, 0
    %34 = vmatprep.subr.mxu0 0.0
    %35 = vmatpush1.msra.mxu0 0.0
    %36 = vmatprep.subr.mxu0 0.0
    %37 = vmatpush1.msra.mxu0 0.0
    %38 = vmatprep.subr.mxu0 0.0
    %39 = vmatpush1.msra.mxu0 0.0
    %40 = vmatprep.subr.mxu0 0.0
    %41 = vmatpush1.msra.mxu0 0.0
    %42 = vmatprep.subr.mxu0 0.0
    %43 = vmatpush1.msra.mxu0 0.0
    %44 = vmatprep.subr.mxu0 0.0
    %45 = vmatpush1.msra.mxu0 0.0
    %46 = vmatprep.subr.mxu0 0.0
    %47 = vmatpush1.msra.mxu0 0.0
    %48 = vmatprep.subr.mxu0 0.0
    %49 = vmatpush1.msra.mxu0 0.0
    %50 = vmatprep.subr.mxu0 0.0
    %51 = vmatpush1.msra.mxu0 0.0
    %52 = vmatprep.subr.mxu0 0.0
    %53 = vmatpush1.msra.mxu0 0.0
    %54 = vmatprep.subr.mxu0 0.0
    %55 = vmatpush1.msra.mxu0 0.0
    %56 = vmatprep.subr.mxu0 0.0
    %57 = vmatpush1.msra.mxu0 0.0
    %58 = vmatprep.subr.mxu0 0.0
    %59 = vmatpush1.msra.mxu0 %v27
    %60 = vmatprep.subr.mxu0 0.0
    %61 = vmatpush1.msra.mxu0 %v26
    %62 = vmatprep.subr.mxu0 0.0
    %63 = vmatpush1.msra.mxu0 %v25
    %64 = vmatprep.subr.mxu0 0.0
    %65 = vmatpush1.msra.mxu0 %v24
    %66 = vmatprep.subr.mxu0 0.0
    %67 = vmatpush2.msra.mxu0 0.0
    %68 = vmatprep.subr.mxu0 0.0
    %69 = vmatpush2.msra.mxu0 0.0
    %70 = vmatprep.subr.mxu0 0.0
    %71 = vmatpush2.msra.mxu0 0.0
    %72 = vmatprep.subr.mxu0 0.0
    %73 = vmatpush2.msra.mxu0 0.0
    %74 = vmatprep.subr.mxu0 0.0
    %75 = vmatpush2.msra.mxu0 0.0
    %76 = vmatprep.subr.mxu0 0.0
    %77 = vmatpush2.msra.mxu0 0.0
    %78 = vmatprep.subr.mxu0 0.0
    %79 = vmatpush2.msra.mxu0 0.0
    %80 = vmatprep.subr.mxu0 0.0
    %81 = vmatpush2.msra.mxu0 0.0
    %82 = vmatprep.subr.mxu0 0.0
    %83 = vmatpush2.msra.mxu0 0.0
    %84 = vmatprep.subr.mxu0 0.0
    %85 = vmatpush2.msra.mxu0 0.0
    %86 = vmatprep.subr.mxu0 0.0
    %87 = vmatpush2.msra.mxu0 0.0
    %88 = vmatprep.subr.mxu0 0.0
    %89 = vmatpush2.msra.mxu0 0.0
    %90 = vmatprep.subr.mxu0 0.0
    %91 = vmatpush2.msra.mxu0 0.0
    %92 = vmatprep.subr.mxu0 0.0
    %93 = vmatpush2.msra.mxu0 0.0
    %94 = vmatprep.subr.mxu0 0.0
    %95 = vmatpush2.msra.mxu0 0.0
    %96 = vmatprep.subr.mxu0 0.0
    %97 = vmatpush2.msra.mxu0 0.0
    %98 = vmatprep.mubr.f32.mxu0 0.0
    %99 = vmatmul.mubr.f32.gmra.mxu0 %v32
    %v100 = vpop.f32.mrf.mxu0
    %v101 = vadd.f32 0.0, %v100
    %v102 = vpop.f32.mrf.mxu0
    %103 = vdwg.mxu0
    %v104 = vadd.f32 %v29, %v101
    %vm105 = vcmask 254976
    %106 = vst.msk [vmem:[%s3] sm:$0x3] %vm105, %v104
    %s107 = scalar_lea.vmem %s0, 2
    %v108 = vld [vmem:[%s107] sm:$0x3]
    %v110 = vsel %vm30, %v104, 0
    %112 = vmatprep.subr.mxu0 0.0
    %113 = vmatpush1.msra.mxu0 0.0
    %114 = vmatprep.subr.mxu0 0.0
    %115 = vmatpush1.msra.mxu0 0.0
    %116 = vmatprep.subr.mxu0 0.0
    %117 = vmatpush1.msra.mxu0 0.0
    %118 = vmatprep.subr.mxu0 0.0
    %119 = vmatpush1.msra.mxu0 0.0
    %120 = vmatprep.subr.mxu0 0.0
    %121 = vmatpush1.msra.mxu0 0.0
    %122 = vmatprep.subr.mxu0 0.0
    %123 = vmatpush1.msra.mxu0 0.0
    %124 = vmatprep.subr.mxu0 0.0
    %125 = vmatpush1.msra.mxu0 0.0
    %126 = vmatprep.subr.mxu0 0.0
    %127 = vmatpush1.msra.mxu0 0.0
    %128 = vmatprep.subr.mxu0 0.0
    %129 = vmatpush1.msra.mxu0 0.0
    %130 = vmatprep.subr.mxu0 0.0
    %131 = vmatpush1.msra.mxu0 0.0
    %132 = vmatprep.subr.mxu0 0.0
    %133 = vmatpush1.msra.mxu0 0.0
    %134 = vmatprep.subr.mxu0 0.0
    %135 = vmatpush1.msra.mxu0 0.0
    %136 = vmatprep.subr.mxu0 0.0
    %137 = vmatpush1.msra.mxu0 %v27
    %138 = vmatprep.subr.mxu0 0.0
    %139 = vmatpush1.msra.mxu0 %v26
    %140 = vmatprep.subr.mxu0 0.0
    %141 = vmatpush1.msra.mxu0 %v25
    %142 = vmatprep.subr.mxu0 0.0
    %143 = vmatpush1.msra.mxu0 %v24
    %144 = vmatprep.subr.mxu0 0.0
    %145 = vmatpush2.msra.mxu0 0.0
    %146 = vmatprep.subr.mxu0 0.0
    %147 = vmatpush2.msra.mxu0 0.0
    %148 = vmatprep.subr.mxu0 0.0
    %149 = vmatpush2.msra.mxu0 0.0
    %150 = vmatprep.subr.mxu0 0.0
    %151 = vmatpush2.msra.mxu0 0.0
    %152 = vmatprep.subr.mxu0 0.0
    %153 = vmatpush2.msra.mxu0 0.0
    %154 = vmatprep.subr.mxu0 0.0
    %155 = vmatpush2.msra.mxu0 0.0
    %156 = vmatprep.subr.mxu0 0.0
    %157 = vmatpush2.msra.mxu0 0.0
    %158 = vmatprep.subr.mxu0 0.0
    %159 = vmatpush2.msra.mxu0 0.0
    %160 = vmatprep.subr.mxu0 0.0
    %161 = vmatpush2.msra.mxu0 0.0
    %162 = vmatprep.subr.mxu0 0.0
    %163 = vmatpush2.msra.mxu0 0.0
    %164 = vmatprep.subr.mxu0 0.0
    %165 = vmatpush2.msra.mxu0 0.0
    %166 = vmatprep.subr.mxu0 0.0
    %167 = vmatpush2.msra.mxu0 0.0
    %168 = vmatprep.subr.mxu0 0.0
    %169 = vmatpush2.msra.mxu0 0.0
    %170 = vmatprep.subr.mxu0 0.0
    %171 = vmatpush2.msra.mxu0 0.0
    %172 = vmatprep.subr.mxu0 0.0
    %173 = vmatpush2.msra.mxu0 0.0
    %174 = vmatprep.subr.mxu0 0.0
    %175 = vmatpush2.msra.mxu0 0.0
    %176 = vmatprep.mubr.f32.mxu0 0.0
    %177 = vmatmul.mubr.f32.gmra.mxu0 %v110
    %v178 = vpop.f32.mrf.mxu0
    %v179 = vadd.f32 0.0, %v178
    %v180 = vpop.f32.mrf.mxu0
    %181 = vdwg.mxu0
    %v182 = vadd.f32 %v108, %v179
    %s183 = scalar_lea.vmem %s3, 2
    %184 = vst.msk [vmem:[%s183] sm:$0x3] %vm105, %v182
    %s185 = scalar_lea.vmem %s0, 4
    %v186 = vld [vmem:[%s185] sm:$0x3]
    %v188 = vsel %vm30, %v182, 0
    %190 = vmatprep.subr.mxu0 0.0
    %191 = vmatpush1.msra.mxu0 0.0
    %192 = vmatprep.subr.mxu0 0.0
    %193 = vmatpush1.msra.mxu0 0.0
    %194 = vmatprep.subr.mxu0 0.0
    %195 = vmatpush1.msra.mxu0 0.0
    %196 = vmatprep.subr.mxu0 0.0
    %197 = vmatpush1.msra.mxu0 0.0
    %198 = vmatprep.subr.mxu0 0.0
    %199 = vmatpush1.msra.mxu0 0.0
    %200 = vmatprep.subr.mxu0 0.0
    %201 = vmatpush1.msra.mxu0 0.0
    %202 = vmatprep.subr.mxu0 0.0
    %203 = vmatpush1.msra.mxu0 0.0
    %204 = vmatprep.subr.mxu0 0.0
    %205 = vmatpush1.msra.mxu0 0.0
    %206 = vmatprep.subr.mxu0 0.0
    %207 = vmatpush1.msra.mxu0 0.0
    %208 = vmatprep.subr.mxu0 0.0
    %209 = vmatpush1.msra.mxu0 0.0
    %210 = vmatprep.subr.mxu0 0.0
    %211 = vmatpush1.msra.mxu0 0.0
    %212 = vmatprep.subr.mxu0 0.0
    %213 = vmatpush1.msra.mxu0 0.0
    %214 = vmatprep.subr.mxu0 0.0
    %215 = vmatpush1.msra.mxu0 %v27
    %216 = vmatprep.subr.mxu0 0.0
    %217 = vmatpush1.msra.mxu0 %v26
    %218 = vmatprep.subr.mxu0 0.0
    %219 = vmatpush1.msra.mxu0 %v25
    %220 = vmatprep.subr.mxu0 0.0
    %221 = vmatpush1.msra.mxu0 %v24
    %222 = vmatprep.subr.mxu0 0.0
    %223 = vmatpush2.msra.mxu0 0.0
    %224 = vmatprep.subr.mxu0 0.0
    %225 = vmatpush2.msra.mxu0 0.0
    %226 = vmatprep.subr.mxu0 0.0
    %227 = vmatpush2.msra.mxu0 0.0
    %228 = vmatprep.subr.mxu0 0.0
    %229 = vmatpush2.msra.mxu0 0.0
    %230 = vmatprep.subr.mxu0 0.0
    %231 = vmatpush2.msra.mxu0 0.0
    %232 = vmatprep.subr.mxu0 0.0
    %233 = vmatpush2.msra.mxu0 0.0
    %234 = vmatprep.subr.mxu0 0.0
    %235 = vmatpush2.msra.mxu0 0.0
    %236 = vmatprep.subr.mxu0 0.0
    %237 = vmatpush2.msra.mxu0 0.0
    %238 = vmatprep.subr.mxu0 0.0
    %239 = vmatpush2.msra.mxu0 0.0
    %240 = vmatprep.subr.mxu0 0.0
    %241 = vmatpush2.msra.mxu0 0.0
    %242 = vmatprep.subr.mxu0 0.0
    %243 = vmatpush2.msra.mxu0 0.0
    %244 = vmatprep.subr.mxu0 0.0
    %245 = vmatpush2.msra.mxu0 0.0
    %246 = vmatprep.subr.mxu0 0.0
    %247 = vmatpush2.msra.mxu0 0.0
    %248 = vmatprep.subr.mxu0 0.0
    %249 = vmatpush2.msra.mxu0 0.0
    %250 = vmatprep.subr.mxu0 0.0
    %251 = vmatpush2.msra.mxu0 0.0
    %252 = vmatprep.subr.mxu0 0.0
    %253 = vmatpush2.msra.mxu0 0.0
    %254 = vmatprep.mubr.f32.mxu0 0.0
    %255 = vmatmul.mubr.f32.gmra.mxu0 %v188
    %v256 = vpop.f32.mrf.mxu0
    %v257 = vadd.f32 0.0, %v256
    %v258 = vpop.f32.mrf.mxu0
    %259 = vdwg.mxu0
    %v260 = vadd.f32 %v186, %v257
    %s261 = scalar_lea.vmem %s3, 4
    %262 = vst.msk [vmem:[%s261] sm:$0x3] %vm105, %v260
    %s263 = scalar_lea.vmem %s0, 6
    %v264 = vld [vmem:[%s263] sm:$0x3]
    %v266 = vsel %vm30, %v260, 0
    %268 = vmatprep.subr.mxu0 0.0
    %269 = vmatpush1.msra.mxu0 0.0
    %270 = vmatprep.subr.mxu0 0.0
    %271 = vmatpush1.msra.mxu0 0.0
    %272 = vmatprep.subr.mxu0 0.0
    %273 = vmatpush1.msra.mxu0 0.0
    %274 = vmatprep.subr.mxu0 0.0
    %275 = vmatpush1.msra.mxu0 0.0
    %276 = vmatprep.subr.mxu0 0.0
    %277 = vmatpush1.msra.mxu0 0.0
    %278 = vmatprep.subr.mxu0 0.0
    %279 = vmatpush1.msra.mxu0 0.0
    %280 = vmatprep.subr.mxu0 0.0
    %281 = vmatpush1.msra.mxu0 0.0
    %282 = vmatprep.subr.mxu0 0.0
    %283 = vmatpush1.msra.mxu0 0.0
    %284 = vmatprep.subr.mxu0 0.0
    %285 = vmatpush1.msra.mxu0 0.0
    %286 = vmatprep.subr.mxu0 0.0
    %287 = vmatpush1.msra.mxu0 0.0
    %288 = vmatprep.subr.mxu0 0.0
    %289 = vmatpush1.msra.mxu0 0.0
    %290 = vmatprep.subr.mxu0 0.0
    %291 = vmatpush1.msra.mxu0 0.0
    %292 = vmatprep.subr.mxu0 0.0
    %293 = vmatpush1.msra.mxu0 %v27
    %294 = vmatprep.subr.mxu0 0.0
    %295 = vmatpush1.msra.mxu0 %v26
    %296 = vmatprep.subr.mxu0 0.0
    %297 = vmatpush1.msra.mxu0 %v25
    %298 = vmatprep.subr.mxu0 0.0
    %299 = vmatpush1.msra.mxu0 %v24
    %300 = vmatprep.subr.mxu0 0.0
    %301 = vmatpush2.msra.mxu0 0.0
    %302 = vmatprep.subr.mxu0 0.0
    %303 = vmatpush2.msra.mxu0 0.0
    %304 = vmatprep.subr.mxu0 0.0
    %305 = vmatpush2.msra.mxu0 0.0
    %306 = vmatprep.subr.mxu0 0.0
    %307 = vmatpush2.msra.mxu0 0.0
    %308 = vmatprep.subr.mxu0 0.0
    %309 = vmatpush2.msra.mxu0 0.0
    %310 = vmatprep.subr.mxu0 0.0
    %311 = vmatpush2.msra.mxu0 0.0
    %312 = vmatprep.subr.mxu0 0.0
    %313 = vmatpush2.msra.mxu0 0.0
    %314 = vmatprep.subr.mxu0 0.0
    %315 = vmatpush2.msra.mxu0 0.0
    %316 = vmatprep.subr.mxu0 0.0
    %317 = vmatpush2.msra.mxu0 0.0
    %318 = vmatprep.subr.mxu0 0.0
    %319 = vmatpush2.msra.mxu0 0.0
    %320 = vmatprep.subr.mxu0 0.0
    %321 = vmatpush2.msra.mxu0 0.0
    %322 = vmatprep.subr.mxu0 0.0
    %323 = vmatpush2.msra.mxu0 0.0
    %324 = vmatprep.subr.mxu0 0.0
    %325 = vmatpush2.msra.mxu0 0.0
    %326 = vmatprep.subr.mxu0 0.0
    %327 = vmatpush2.msra.mxu0 0.0
    %328 = vmatprep.subr.mxu0 0.0
    %329 = vmatpush2.msra.mxu0 0.0
    %330 = vmatprep.subr.mxu0 0.0
    %331 = vmatpush2.msra.mxu0 0.0
    %332 = vmatprep.mubr.f32.mxu0 0.0
    %333 = vmatmul.mubr.f32.gmra.mxu0 %v266
    %v334 = vpop.f32.mrf.mxu0
    %v335 = vadd.f32 0.0, %v334
    %v336 = vpop.f32.mrf.mxu0
    %337 = vdwg.mxu0
    %v338 = vadd.f32 %v264, %v335
    %s339 = scalar_lea.vmem %s3, 6
    %340 = vst.msk [vmem:[%s339] sm:$0x3] %vm105, %v338
    %s341 = scalar_lea.vmem %s0, 8
    %v342 = vld [vmem:[%s341] sm:$0x3]
    %v344 = vsel %vm30, %v338, 0
    %346 = vmatprep.subr.mxu0 0.0
    %347 = vmatpush1.msra.mxu0 0.0
    %348 = vmatprep.subr.mxu0 0.0
    %349 = vmatpush1.msra.mxu0 0.0
    %350 = vmatprep.subr.mxu0 0.0
    %351 = vmatpush1.msra.mxu0 0.0
    %352 = vmatprep.subr.mxu0 0.0
    %353 = vmatpush1.msra.mxu0 0.0
    %354 = vmatprep.subr.mxu0 0.0
    %355 = vmatpush1.msra.mxu0 0.0
    %356 = vmatprep.subr.mxu0 0.0
    %357 = vmatpush1.msra.mxu0 0.0
    %358 = vmatprep.subr.mxu0 0.0
    %359 = vmatpush1.msra.mxu0 0.0
    %360 = vmatprep.subr.mxu0 0.0
    %361 = vmatpush1.msra.mxu0 0.0
    %362 = vmatprep.subr.mxu0 0.0
    %363 = vmatpush1.msra.mxu0 0.0
    %364 = vmatprep.subr.mxu0 0.0
    %365 = vmatpush1.msra.mxu0 0.0
    %366 = vmatprep.subr.mxu0 0.0
    %367 = vmatpush1.msra.mxu0 0.0
    %368 = vmatprep.subr.mxu0 0.0
    %369 = vmatpush1.msra.mxu0 0.0
    %370 = vmatprep.subr.mxu0 0.0
    %371 = vmatpush1.msra.mxu0 %v27
    %372 = vmatprep.subr.mxu0 0.0
    %373 = vmatpush1.msra.mxu0 %v26
    %374 = vmatprep.subr.mxu0 0.0
    %375 = vmatpush1.msra.mxu0 %v25
    %376 = vmatprep.subr.mxu0 0.0
    %377 = vmatpush1.msra.mxu0 %v24
    %378 = vmatprep.subr.mxu0 0.0
    %379 = vmatpush2.msra.mxu0 0.0
    %380 = vmatprep.subr.mxu0 0.0
    %381 = vmatpush2.msra.mxu0 0.0
    %382 = vmatprep.subr.mxu0 0.0
    %383 = vmatpush2.msra.mxu0 0.0
    %384 = vmatprep.subr.mxu0 0.0
    %385 = vmatpush2.msra.mxu0 0.0
    %386 = vmatprep.subr.mxu0 0.0
    %387 = vmatpush2.msra.mxu0 0.0
    %388 = vmatprep.subr.mxu0 0.0
    %389 = vmatpush2.msra.mxu0 0.0
    %390 = vmatprep.subr.mxu0 0.0
    %391 = vmatpush2.msra.mxu0 0.0
    %392 = vmatprep.subr.mxu0 0.0
    %393 = vmatpush2.msra.mxu0 0.0
    %394 = vmatprep.subr.mxu0 0.0
    %395 = vmatpush2.msra.mxu0 0.0
    %396 = vmatprep.subr.mxu0 0.0
    %397 = vmatpush2.msra.mxu0 0.0
    %398 = vmatprep.subr.mxu0 0.0
    %399 = vmatpush2.msra.mxu0 0.0
    %400 = vmatprep.subr.mxu0 0.0
    %401 = vmatpush2.msra.mxu0 0.0
    %402 = vmatprep.subr.mxu0 0.0
    %403 = vmatpush2.msra.mxu0 0.0
    %404 = vmatprep.subr.mxu0 0.0
    %405 = vmatpush2.msra.mxu0 0.0
    %406 = vmatprep.subr.mxu0 0.0
    %407 = vmatpush2.msra.mxu0 0.0
    %408 = vmatprep.subr.mxu0 0.0
    %409 = vmatpush2.msra.mxu0 0.0
    %410 = vmatprep.mubr.f32.mxu0 0.0
    %411 = vmatmul.mubr.f32.gmra.mxu0 %v344
    %v412 = vpop.f32.mrf.mxu0
    %v413 = vadd.f32 0.0, %v412
    %v414 = vpop.f32.mrf.mxu0
    %415 = vdwg.mxu0
    %v416 = vadd.f32 %v342, %v413
    %s417 = scalar_lea.vmem %s3, 8
    %418 = vst.msk [vmem:[%s417] sm:$0x3] %vm105, %v416
    %s419 = scalar_lea.vmem %s0, 10
    %v420 = vld [vmem:[%s419] sm:$0x3]
    %v422 = vsel %vm30, %v416, 0
    %424 = vmatprep.subr.mxu0 0.0
    %425 = vmatpush1.msra.mxu0 0.0
    %426 = vmatprep.subr.mxu0 0.0
    %427 = vmatpush1.msra.mxu0 0.0
    %428 = vmatprep.subr.mxu0 0.0
    %429 = vmatpush1.msra.mxu0 0.0
    %430 = vmatprep.subr.mxu0 0.0
    %431 = vmatpush1.msra.mxu0 0.0
    %432 = vmatprep.subr.mxu0 0.0
    %433 = vmatpush1.msra.mxu0 0.0
    %434 = vmatprep.subr.mxu0 0.0
    %435 = vmatpush1.msra.mxu0 0.0
    %436 = vmatprep.subr.mxu0 0.0
    %437 = vmatpush1.msra.mxu0 0.0
    %438 = vmatprep.subr.mxu0 0.0
    %439 = vmatpush1.msra.mxu0 0.0
    %440 = vmatprep.subr.mxu0 0.0
    %441 = vmatpush1.msra.mxu0 0.0
    %442 = vmatprep.subr.mxu0 0.0
    %443 = vmatpush1.msra.mxu0 0.0
    %444 = vmatprep.subr.mxu0 0.0
    %445 = vmatpush1.msra.mxu0 0.0
    %446 = vmatprep.subr.mxu0 0.0
    %447 = vmatpush1.msra.mxu0 0.0
    %448 = vmatprep.subr.mxu0 0.0
    %449 = vmatpush1.msra.mxu0 %v27
    %450 = vmatprep.subr.mxu0 0.0
    %451 = vmatpush1.msra.mxu0 %v26
    %452 = vmatprep.subr.mxu0 0.0
    %453 = vmatpush1.msra.mxu0 %v25
    %454 = vmatprep.subr.mxu0 0.0
    %455 = vmatpush1.msra.mxu0 %v24
    %456 = vmatprep.subr.mxu0 0.0
    %457 = vmatpush2.msra.mxu0 0.0
    %458 = vmatprep.subr.mxu0 0.0
    %459 = vmatpush2.msra.mxu0 0.0
    %460 = vmatprep.subr.mxu0 0.0
    %461 = vmatpush2.msra.mxu0 0.0
    %462 = vmatprep.subr.mxu0 0.0
    %463 = vmatpush2.msra.mxu0 0.0
    %464 = vmatprep.subr.mxu0 0.0
    %465 = vmatpush2.msra.mxu0 0.0
    %466 = vmatprep.subr.mxu0 0.0
    %467 = vmatpush2.msra.mxu0 0.0
    %468 = vmatprep.subr.mxu0 0.0
    %469 = vmatpush2.msra.mxu0 0.0
    %470 = vmatprep.subr.mxu0 0.0
    %471 = vmatpush2.msra.mxu0 0.0
    %472 = vmatprep.subr.mxu0 0.0
    %473 = vmatpush2.msra.mxu0 0.0
    %474 = vmatprep.subr.mxu0 0.0
    %475 = vmatpush2.msra.mxu0 0.0
    %476 = vmatprep.subr.mxu0 0.0
    %477 = vmatpush2.msra.mxu0 0.0
    %478 = vmatprep.subr.mxu0 0.0
    %479 = vmatpush2.msra.mxu0 0.0
    %480 = vmatprep.subr.mxu0 0.0
    %481 = vmatpush2.msra.mxu0 0.0
    %482 = vmatprep.subr.mxu0 0.0
    %483 = vmatpush2.msra.mxu0 0.0
    %484 = vmatprep.subr.mxu0 0.0
    %485 = vmatpush2.msra.mxu0 0.0
    %486 = vmatprep.subr.mxu0 0.0
    %487 = vmatpush2.msra.mxu0 0.0
    %488 = vmatprep.mubr.f32.mxu0 0.0
    %489 = vmatmul.mubr.f32.gmra.mxu0 %v422
    %v490 = vpop.f32.mrf.mxu0
    %v491 = vadd.f32 0.0, %v490
    %v492 = vpop.f32.mrf.mxu0
    %493 = vdwg.mxu0
    %v494 = vadd.f32 %v420, %v491
    %s495 = scalar_lea.vmem %s3, 10
    %496 = vst.msk [vmem:[%s495] sm:$0x3] %vm105, %v494
    %s497 = scalar_lea.vmem %s0, 12
    %v498 = vld [vmem:[%s497] sm:$0x3]
    %v500 = vsel %vm30, %v494, 0
    %502 = vmatprep.subr.mxu0 0.0
    %503 = vmatpush1.msra.mxu0 0.0
    %504 = vmatprep.subr.mxu0 0.0
    %505 = vmatpush1.msra.mxu0 0.0
    %506 = vmatprep.subr.mxu0 0.0
    %507 = vmatpush1.msra.mxu0 0.0
    %508 = vmatprep.subr.mxu0 0.0
    %509 = vmatpush1.msra.mxu0 0.0
    %510 = vmatprep.subr.mxu0 0.0
    %511 = vmatpush1.msra.mxu0 0.0
    %512 = vmatprep.subr.mxu0 0.0
    %513 = vmatpush1.msra.mxu0 0.0
    %514 = vmatprep.subr.mxu0 0.0
    %515 = vmatpush1.msra.mxu0 0.0
    %516 = vmatprep.subr.mxu0 0.0
    %517 = vmatpush1.msra.mxu0 0.0
    %518 = vmatprep.subr.mxu0 0.0
    %519 = vmatpush1.msra.mxu0 0.0
    %520 = vmatprep.subr.mxu0 0.0
    %521 = vmatpush1.msra.mxu0 0.0
    %522 = vmatprep.subr.mxu0 0.0
    %523 = vmatpush1.msra.mxu0 0.0
    %524 = vmatprep.subr.mxu0 0.0
    %525 = vmatpush1.msra.mxu0 0.0
    %526 = vmatprep.subr.mxu0 0.0
    %527 = vmatpush1.msra.mxu0 %v27
    %528 = vmatprep.subr.mxu0 0.0
    %529 = vmatpush1.msra.mxu0 %v26
    %530 = vmatprep.subr.mxu0 0.0
    %531 = vmatpush1.msra.mxu0 %v25
    %532 = vmatprep.subr.mxu0 0.0
    %533 = vmatpush1.msra.mxu0 %v24
    %534 = vmatprep.subr.mxu0 0.0
    %535 = vmatpush2.msra.mxu0 0.0
    %536 = vmatprep.subr.mxu0 0.0
    %537 = vmatpush2.msra.mxu0 0.0
    %538 = vmatprep.subr.mxu0 0.0
    %539 = vmatpush2.msra.mxu0 0.0
    %540 = vmatprep.subr.mxu0 0.0
    %541 = vmatpush2.msra.mxu0 0.0
    %542 = vmatprep.subr.mxu0 0.0
    %543 = vmatpush2.msra.mxu0 0.0
    %544 = vmatprep.subr.mxu0 0.0
    %545 = vmatpush2.msra.mxu0 0.0
    %546 = vmatprep.subr.mxu0 0.0
    %547 = vmatpush2.msra.mxu0 0.0
    %548 = vmatprep.subr.mxu0 0.0
    %549 = vmatpush2.msra.mxu0 0.0
    %550 = vmatprep.subr.mxu0 0.0
    %551 = vmatpush2.msra.mxu0 0.0
    %552 = vmatprep.subr.mxu0 0.0
    %553 = vmatpush2.msra.mxu0 0.0
    %554 = vmatprep.subr.mxu0 0.0
    %555 = vmatpush2.msra.mxu0 0.0
    %556 = vmatprep.subr.mxu0 0.0
    %557 = vmatpush2.msra.mxu0 0.0
    %558 = vmatprep.subr.mxu0 0.0
    %559 = vmatpush2.msra.mxu0 0.0
    %560 = vmatprep.subr.mxu0 0.0
    %561 = vmatpush2.msra.mxu0 0.0
    %562 = vmatprep.subr.mxu0 0.0
    %563 = vmatpush2.msra.mxu0 0.0
    %564 = vmatprep.subr.mxu0 0.0
    %565 = vmatpush2.msra.mxu0 0.0
    %566 = vmatprep.mubr.f32.mxu0 0.0
    %567 = vmatmul.mubr.f32.gmra.mxu0 %v500
    %v568 = vpop.f32.mrf.mxu0
    %v569 = vadd.f32 0.0, %v568
    %v570 = vpop.f32.mrf.mxu0
    %571 = vdwg.mxu0
    %v572 = vadd.f32 %v498, %v569
    %s573 = scalar_lea.vmem %s3, 12
    %574 = vst.msk [vmem:[%s573] sm:$0x3] %vm105, %v572
    %s575 = scalar_lea.vmem %s0, 14
    %v576 = vld [vmem:[%s575] sm:$0x3]
    %v578 = vsel %vm30, %v572, 0
    %580 = vmatprep.subr.mxu0 0.0
    %581 = vmatpush1.msra.mxu0 0.0
    %582 = vmatprep.subr.mxu0 0.0
    %583 = vmatpush1.msra.mxu0 0.0
    %584 = vmatprep.subr.mxu0 0.0
    %585 = vmatpush1.msra.mxu0 0.0
    %586 = vmatprep.subr.mxu0 0.0
    %587 = vmatpush1.msra.mxu0 0.0
    %588 = vmatprep.subr.mxu0 0.0
    %589 = vmatpush1.msra.mxu0 0.0
    %590 = vmatprep.subr.mxu0 0.0
    %591 = vmatpush1.msra.mxu0 0.0
    %592 = vmatprep.subr.mxu0 0.0
    %593 = vmatpush1.msra.mxu0 0.0
    %594 = vmatprep.subr.mxu0 0.0
    %595 = vmatpush1.msra.mxu0 0.0
    %596 = vmatprep.subr.mxu0 0.0
    %597 = vmatpush1.msra.mxu0 0.0
    %598 = vmatprep.subr.mxu0 0.0
    %599 = vmatpush1.msra.mxu0 0.0
    %600 = vmatprep.subr.mxu0 0.0
    %601 = vmatpush1.msra.mxu0 0.0
    %602 = vmatprep.subr.mxu0 0.0
    %603 = vmatpush1.msra.mxu0 0.0
    %604 = vmatprep.subr.mxu0 0.0
    %605 = vmatpush1.msra.mxu0 %v27
    %606 = vmatprep.subr.mxu0 0.0
    %607 = vmatpush1.msra.mxu0 %v26
    %608 = vmatprep.subr.mxu0 0.0
    %609 = vmatpush1.msra.mxu0 %v25
    %610 = vmatprep.subr.mxu0 0.0
    %611 = vmatpush1.msra.mxu0 %v24
    %612 = vmatprep.subr.mxu0 0.0
    %613 = vmatpush2.msra.mxu0 0.0
    %614 = vmatprep.subr.mxu0 0.0
    %615 = vmatpush2.msra.mxu0 0.0
    %616 = vmatprep.subr.mxu0 0.0
    %617 = vmatpush2.msra.mxu0 0.0
    %618 = vmatprep.subr.mxu0 0.0
    %619 = vmatpush2.msra.mxu0 0.0
    %620 = vmatprep.subr.mxu0 0.0
    %621 = vmatpush2.msra.mxu0 0.0
    %622 = vmatprep.subr.mxu0 0.0
    %623 = vmatpush2.msra.mxu0 0.0
    %624 = vmatprep.subr.mxu0 0.0
    %625 = vmatpush2.msra.mxu0 0.0
    %626 = vmatprep.subr.mxu0 0.0
    %627 = vmatpush2.msra.mxu0 0.0
    %628 = vmatprep.subr.mxu0 0.0
    %629 = vmatpush2.msra.mxu0 0.0
    %630 = vmatprep.subr.mxu0 0.0
    %631 = vmatpush2.msra.mxu0 0.0
    %632 = vmatprep.subr.mxu0 0.0
    %633 = vmatpush2.msra.mxu0 0.0
    %634 = vmatprep.subr.mxu0 0.0
    %635 = vmatpush2.msra.mxu0 0.0
    %636 = vmatprep.subr.mxu0 0.0
    %637 = vmatpush2.msra.mxu0 0.0
    %638 = vmatprep.subr.mxu0 0.0
    %639 = vmatpush2.msra.mxu0 0.0
    %640 = vmatprep.subr.mxu0 0.0
    %641 = vmatpush2.msra.mxu0 0.0
    %642 = vmatprep.subr.mxu0 0.0
    %643 = vmatpush2.msra.mxu0 0.0
    %644 = vmatprep.mubr.f32.mxu0 0.0
    %645 = vmatmul.mubr.f32.gmra.mxu0 %v578
    %v646 = vpop.f32.mrf.mxu0
    %v647 = vadd.f32 0.0, %v646
    %v648 = vpop.f32.mrf.mxu0
    %649 = vdwg.mxu0
    %v650 = vadd.f32 %v576, %v647
    %s651 = scalar_lea.vmem %s3, 14
    %652 = vst.msk [vmem:[%s651] sm:$0x3] %vm105, %v650
    %653 = vst.msk [vmem:[#allocation2] sm:$0x3] %vm105, %v650
    // Predicated region
    $region18: #{rnn_sequence_forward.4} parent=1 // pred_check
      _
    $region19: #{rnn_sequence_forward.4} parent=1 // pred_check_branch
      %655 = sbr.rel (0) target = $region21
    $region20: #{rnn_sequence_forward.4} parent=1 // pred_region
      _
    $region21: #{rnn_sequence_forward.4} parent=1 // pred_fallthru
      _
    // Predicated region
    $region22: #{rnn_sequence_forward.4} parent=1 // pred_check
      _
    $region23: #{rnn_sequence_forward.4} parent=1 // pred_check_branch
      %657 = sbr.rel (0) target = $region25
    $region24: #{rnn_sequence_forward.4} parent=1 // pred_region
      %s659 = ssub.s32 32, 32
      %660 = vsyncadd [#allocation3], %s659
      %s662 = sshll.u32 [#allocation2], 4
      %s663 = int_to_ptr.vmem [resolvable:$true] %s662
      %665 = dma.vmem_to_hbm [thread:$0]  %s663, 32, %s4, [#allocation3]
    $region25: #{rnn_sequence_forward.4} parent=1 // pred_fallthru
      _
    // Predicated region
    $region26: #{rnn_sequence_forward.4} parent=1 // pred_check
      _
    $region27: #{rnn_sequence_forward.4} parent=1 // pred_check_branch
      %667 = sbr.rel (0) target = $region29
    $region28: #{rnn_sequence_forward.4} parent=1 // pred_region
      _
    $region29: #{rnn_sequence_forward.4} parent=1 // pred_fallthru
      _
    // Predicated region
    $region30: #{rnn_sequence_forward.4} parent=1 // pred_check
      _
    $region31: #{rnn_sequence_forward.4} parent=1 // pred_check_branch
      %669 = sbr.rel (0) target = $region33
    $region32: #{rnn_sequence_forward.4} parent=1 // pred_region
      %670 = dma.done [#allocation3], 32
    $region33: #{rnn_sequence_forward.4} parent=1 // pred_fallthru
      _
    %671 = vsyncpa [#allocation3], 1

// kernel: rnn_sequence_forward.5
$region0: #{rnn_sequence_forward.5}
  #allocation0 [shape = 'u32[]', space=smem, size = 0x4, offset = 0x4, fixed_abs, tag = 'smem constant byte address 0x4 - core index']
  #allocation1 [shape = 'u32[144,128]{1,0:T(1,128)}', space=vmem, size = 0x12000, scoped, tag = 'internal scratch']
  %s0 = inlined_call_operand.vmem [shape: f32[16,16], index: 0, kind: input, shape index: {}]
  %s1 = inlined_call_operand.vmem [shape: f32[16,32], index: 1, kind: input, shape index: {}]
  %s2 = inlined_call_operand.vmem [shape: f32[16,32], index: 2, kind: input, shape index: {}]
  %s3 = inlined_call_operand.vmem [shape: f32[32,16], index: 3, kind: input, shape index: {}]
  %s4 = inlined_call_operand.vmem [shape: f32[32,16], index: 4, kind: input, shape index: {}]
  %s5 = inlined_call_operand.vmem [shape: f32[16,16], index: 5, kind: input, shape index: {}]
  %s6 = inlined_call_operand.vmem [shape: f32[1,16], index: 6, kind: input, shape index: {}]
  %s7 = inlined_call_operand.hbm [shape: f32[16,16], index: 7, kind: output, shape index: {}]
  %s8 = sld [smem:[#allocation0]]
  $region38: #{rnn_sequence_forward.5} parent=0
    _
  %s10 = ssub.s32 1, %s8
  %s11 = scalar_select 0, %s10, %s8
  $region1: #{rnn_sequence_forward.5} parent=0
    #allocation2 [shape = 'u8[8192]{0}', space=vmem, size = 0x2000, scoped, tag = 'output window, operand 0, single buffered']
    #allocation3 [shape = 's32[1]{0}', space=sflag, size = 0x4, scoped, tag = 'scoped memory for rnn_sequence_forward.5']
    %12 = vsyncpa [#allocation3], 0
    // Predicated region
    $region2: #{rnn_sequence_forward.5} parent=1 // pred_check
      _
    $region3: #{rnn_sequence_forward.5} parent=1 // pred_check_branch
      %14 = sbr.rel (0) target = $region5
    $region4: #{rnn_sequence_forward.5} parent=1 // pred_region
      _
    $region5: #{rnn_sequence_forward.5} parent=1 // pred_fallthru
      _
    // Predicated region
    $region6: #{rnn_sequence_forward.5} parent=1 // pred_check
      _
    $region7: #{rnn_sequence_forward.5} parent=1 // pred_check_branch
      %16 = sbr.rel (0) target = $region9
    $region8: #{rnn_sequence_forward.5} parent=1 // pred_region
      _
    $region9: #{rnn_sequence_forward.5} parent=1 // pred_fallthru
      _
    // Predicated region
    $region10: #{rnn_sequence_forward.5} parent=1 // pred_check
      _
    $region11: #{rnn_sequence_forward.5} parent=1 // pred_check_branch
      %18 = sbr.rel (0) target = $region13
    $region12: #{rnn_sequence_forward.5} parent=1 // pred_region
      _
    $region13: #{rnn_sequence_forward.5} parent=1 // pred_fallthru
      _
    // Predicated region
    $region14: #{rnn_sequence_forward.5} parent=1 // pred_check
      _
    $region15: #{rnn_sequence_forward.5} parent=1 // pred_check_branch
      %20 = sbr.rel (0) target = $region17
    $region16: #{rnn_sequence_forward.5} parent=1 // pred_region
      _
    $region17: #{rnn_sequence_forward.5} parent=1 // pred_fallthru
      _
    // Predicated region
    $region18: #{rnn_sequence_forward.5} parent=1 // pred_check
      _
    $region19: #{rnn_sequence_forward.5} parent=1 // pred_check_branch
      %22 = sbr.rel (0) target = $region21
    $region20: #{rnn_sequence_forward.5} parent=1 // pred_region
      _
    $region21: #{rnn_sequence_forward.5} parent=1 // pred_fallthru
      _
    // Predicated region
    $region22: #{rnn_sequence_forward.5} parent=1 // pred_check
      _
    $region23: #{rnn_sequence_forward.5} parent=1 // pred_check_branch
      %24 = sbr.rel (0) target = $region25
    $region24: #{rnn_sequence_forward.5} parent=1 // pred_region
      _
    $region25: #{rnn_sequence_forward.5} parent=1 // pred_fallthru
      _
    // Predicated region
    $region26: #{rnn_sequence_forward.5} parent=1 // pred_check
      _
    $region27: #{rnn_sequence_forward.5} parent=1 // pred_check_branch
      %26 = sbr.rel (0) target = $region29
    $region28: #{rnn_sequence_forward.5} parent=1 // pred_region
      _
    $region29: #{rnn_sequence_forward.5} parent=1 // pred_fallthru
      _
    %v27 = vld [vmem:[%s0] sm:$0xff]
    %v28 = vld [vmem:[%s0 + $0x8] sm:$0xff]
    %v29 = vld [vmem:[%s1] sm:$0xff]
    %v30 = vld [vmem:[%s1 + $0x8] sm:$0xff]
    %v31 = vld [vmem:[%s3] sm:$0xff]
    %v32 = vld [vmem:[%s3 + $0x8] sm:$0xff]
    %v33 = vld [vmem:[%s3 + $0x10] sm:$0xff]
    %v34 = vld [vmem:[%s3 + $0x18] sm:$0xff]
    %vm35 = vcmask 261120
    %v37 = vsel %vm35, %v29, 0
    %v40 = vsel %vm35, %v30, 0
    %42 = vmatprep.subr.mxu0 0.0
    %43 = vmatpush1.msra.mxu0 0.0
    %44 = vmatprep.subr.mxu0 0.0
    %45 = vmatpush1.msra.mxu0 0.0
    %46 = vmatprep.subr.mxu0 0.0
    %47 = vmatpush1.msra.mxu0 0.0
    %48 = vmatprep.subr.mxu0 0.0
    %49 = vmatpush1.msra.mxu0 0.0
    %50 = vmatprep.subr.mxu0 0.0
    %51 = vmatpush1.msra.mxu0 0.0
    %52 = vmatprep.subr.mxu0 0.0
    %53 = vmatpush1.msra.mxu0 0.0
    %54 = vmatprep.subr.mxu0 0.0
    %55 = vmatpush1.msra.mxu0 0.0
    %56 = vmatprep.subr.mxu0 0.0
    %57 = vmatpush1.msra.mxu0 0.0
    %58 = vmatprep.subr.mxu0 0.0
    %59 = vmatpush1.msra.mxu0 0.0
    %60 = vmatprep.subr.mxu0 0.0
    %61 = vmatpush1.msra.mxu0 0.0
    %62 = vmatprep.subr.mxu0 0.0
    %63 = vmatpush1.msra.mxu0 0.0
    %64 = vmatprep.subr.mxu0 0.0
    %65 = vmatpush1.msra.mxu0 0.0
    %66 = vmatprep.subr.mxu0 0.0
    %67 = vmatpush1.msra.mxu0 %v34
    %68 = vmatprep.subr.mxu0 0.0
    %69 = vmatpush1.msra.mxu0 %v33
    %70 = vmatprep.subr.mxu0 0.0
    %71 = vmatpush1.msra.mxu0 %v32
    %72 = vmatprep.subr.mxu0 0.0
    %73 = vmatpush1.msra.mxu0 %v31
    %74 = vmatprep.subr.mxu0 0.0
    %75 = vmatpush2.msra.mxu0 0.0
    %76 = vmatprep.subr.mxu0 0.0
    %77 = vmatpush2.msra.mxu0 0.0
    %78 = vmatprep.subr.mxu0 0.0
    %79 = vmatpush2.msra.mxu0 0.0
    %80 = vmatprep.subr.mxu0 0.0
    %81 = vmatpush2.msra.mxu0 0.0
    %82 = vmatprep.subr.mxu0 0.0
    %83 = vmatpush2.msra.mxu0 0.0
    %84 = vmatprep.subr.mxu0 0.0
    %85 = vmatpush2.msra.mxu0 0.0
    %86 = vmatprep.subr.mxu0 0.0
    %87 = vmatpush2.msra.mxu0 0.0
    %88 = vmatprep.subr.mxu0 0.0
    %89 = vmatpush2.msra.mxu0 0.0
    %90 = vmatprep.subr.mxu0 0.0
    %91 = vmatpush2.msra.mxu0 0.0
    %92 = vmatprep.subr.mxu0 0.0
    %93 = vmatpush2.msra.mxu0 0.0
    %94 = vmatprep.subr.mxu0 0.0
    %95 = vmatpush2.msra.mxu0 0.0
    %96 = vmatprep.subr.mxu0 0.0
    %97 = vmatpush2.msra.mxu0 0.0
    %98 = vmatprep.subr.mxu0 0.0
    %99 = vmatpush2.msra.mxu0 0.0
    %100 = vmatprep.subr.mxu0 0.0
    %101 = vmatpush2.msra.mxu0 0.0
    %102 = vmatprep.subr.mxu0 0.0
    %103 = vmatpush2.msra.mxu0 0.0
    %104 = vmatprep.subr.mxu0 0.0
    %105 = vmatpush2.msra.mxu0 0.0
    %106 = vmatprep.mubr.f32.mxu0 0.0
    %107 = vmatmul.mubr.f32.gmra.mxu0 %v37
    %v108 = vpop.f32.mrf.mxu0
    %v109 = vadd.f32 0.0, %v108
    %v110 = vpop.f32.mrf.mxu0
    %111 = vmatprep.mubr.f32.mxu0 0.0
    %112 = vmatmul.mubr.f32.gmra.mxu0 %v40
    %v113 = vpop.f32.mrf.mxu0
    %v114 = vadd.f32 0.0, %v113
    %v115 = vpop.f32.mrf.mxu0
    %116 = vdwg.mxu0
    %v117 = vadd.f32 %v27, %v109
    %v118 = vadd.f32 %v28, %v114
    %v119 = vld [vmem:[%s2] sm:$0xff]
    %v120 = vld [vmem:[%s2 + $0x8] sm:$0xff]
    %v121 = vld [vmem:[%s4] sm:$0xff]
    %v122 = vld [vmem:[%s4 + $0x8] sm:$0xff]
    %v123 = vld [vmem:[%s4 + $0x10] sm:$0xff]
    %v124 = vld [vmem:[%s4 + $0x18] sm:$0xff]
    %v125 = vld [vmem:[%s5] sm:$0xff]
    %v126 = vld [vmem:[%s5 + $0x8] sm:$0xff]
    %vm127 = vcmask 130048
    %v129 = vsel %vm127, %v117, 0
    %v132 = vsel %vm127, %v118, 0
    %134 = vmatprep.subr.mxu0 0.0
    %135 = vmatpush1.msra.mxu0 0.0
    %136 = vmatprep.subr.mxu0 0.0
    %137 = vmatpush1.msra.mxu0 0.0
    %138 = vmatprep.subr.mxu0 0.0
    %139 = vmatpush1.msra.mxu0 0.0
    %140 = vmatprep.subr.mxu0 0.0
    %141 = vmatpush1.msra.mxu0 0.0
    %142 = vmatprep.subr.mxu0 0.0
    %143 = vmatpush1.msra.mxu0 0.0
    %144 = vmatprep.subr.mxu0 0.0
    %145 = vmatpush1.msra.mxu0 0.0
    %146 = vmatprep.subr.mxu0 0.0
    %147 = vmatpush1.msra.mxu0 0.0
    %148 = vmatprep.subr.mxu0 0.0
    %149 = vmatpush1.msra.mxu0 0.0
    %150 = vmatprep.subr.mxu0 0.0
    %151 = vmatpush1.msra.mxu0 0.0
    %152 = vmatprep.subr.mxu0 0.0
    %153 = vmatpush1.msra.mxu0 0.0
    %154 = vmatprep.subr.mxu0 0.0
    %155 = vmatpush1.msra.mxu0 0.0
    %156 = vmatprep.subr.mxu0 0.0
    %157 = vmatpush1.msra.mxu0 0.0
    %158 = vmatprep.subr.mxu0 0.0
    %159 = vmatpush1.msra.mxu0 0.0
    %160 = vmatprep.subr.mxu0 0.0
    %161 = vmatpush1.msra.mxu0 0.0
    %162 = vmatprep.subr.mxu0 0.0
    %163 = vmatpush1.msra.mxu0 %v126
    %164 = vmatprep.subr.mxu0 0.0
    %165 = vmatpush1.msra.mxu0 %v125
    %166 = vmatprep.subr.mxu0 0.0
    %167 = vmatpush2.msra.mxu0 0.0
    %168 = vmatprep.subr.mxu0 0.0
    %169 = vmatpush2.msra.mxu0 0.0
    %170 = vmatprep.subr.mxu0 0.0
    %171 = vmatpush2.msra.mxu0 0.0
    %172 = vmatprep.subr.mxu0 0.0
    %173 = vmatpush2.msra.mxu0 0.0
    %174 = vmatprep.subr.mxu0 0.0
    %175 = vmatpush2.msra.mxu0 0.0
    %176 = vmatprep.subr.mxu0 0.0
    %177 = vmatpush2.msra.mxu0 0.0
    %178 = vmatprep.subr.mxu0 0.0
    %179 = vmatpush2.msra.mxu0 0.0
    %180 = vmatprep.subr.mxu0 0.0
    %181 = vmatpush2.msra.mxu0 0.0
    %182 = vmatprep.subr.mxu0 0.0
    %183 = vmatpush2.msra.mxu0 0.0
    %184 = vmatprep.subr.mxu0 0.0
    %185 = vmatpush2.msra.mxu0 0.0
    %186 = vmatprep.subr.mxu0 0.0
    %187 = vmatpush2.msra.mxu0 0.0
    %188 = vmatprep.subr.mxu0 0.0
    %189 = vmatpush2.msra.mxu0 0.0
    %190 = vmatprep.subr.mxu0 0.0
    %191 = vmatpush2.msra.mxu0 0.0
    %192 = vmatprep.subr.mxu0 0.0
    %193 = vmatpush2.msra.mxu0 0.0
    %194 = vmatprep.subr.mxu0 0.0
    %195 = vmatpush2.msra.mxu0 0.0
    %196 = vmatprep.subr.mxu0 0.0
    %197 = vmatpush2.msra.mxu0 0.0
    %198 = vmatprep.mubr.f32.mxu0 0.0
    %199 = vmatmul.mubr.f32.gmra.mxu0 %v129
    %v200 = vpop.f32.mrf.mxu0
    %v201 = vadd.f32 0.0, %v200
    %v202 = vpop.f32.mrf.mxu0
    %203 = vmatprep.mubr.f32.mxu0 0.0
    %204 = vmatmul.mubr.f32.gmra.mxu0 %v132
    %v205 = vpop.f32.mrf.mxu0
    %v206 = vadd.f32 0.0, %v205
    %v207 = vpop.f32.mrf.mxu0
    %208 = vdwg.mxu0
    %v210 = vsel %vm35, %v119, 0
    %v213 = vsel %vm35, %v120, 0
    %215 = vmatprep.subr.mxu0 0.0
    %216 = vmatpush1.msra.mxu0 0.0
    %217 = vmatprep.subr.mxu0 0.0
    %218 = vmatpush1.msra.mxu0 0.0
    %219 = vmatprep.subr.mxu0 0.0
    %220 = vmatpush1.msra.mxu0 0.0
    %221 = vmatprep.subr.mxu0 0.0
    %222 = vmatpush1.msra.mxu0 0.0
    %223 = vmatprep.subr.mxu0 0.0
    %224 = vmatpush1.msra.mxu0 0.0
    %225 = vmatprep.subr.mxu0 0.0
    %226 = vmatpush1.msra.mxu0 0.0
    %227 = vmatprep.subr.mxu0 0.0
    %228 = vmatpush1.msra.mxu0 0.0
    %229 = vmatprep.subr.mxu0 0.0
    %230 = vmatpush1.msra.mxu0 0.0
    %231 = vmatprep.subr.mxu0 0.0
    %232 = vmatpush1.msra.mxu0 0.0
    %233 = vmatprep.subr.mxu0 0.0
    %234 = vmatpush1.msra.mxu0 0.0
    %235 = vmatprep.subr.mxu0 0.0
    %236 = vmatpush1.msra.mxu0 0.0
    %237 = vmatprep.subr.mxu0 0.0
    %238 = vmatpush1.msra.mxu0 0.0
    %239 = vmatprep.subr.mxu0 0.0
    %240 = vmatpush1.msra.mxu0 %v124
    %241 = vmatprep.subr.mxu0 0.0
    %242 = vmatpush1.msra.mxu0 %v123
    %243 = vmatprep.subr.mxu0 0.0
    %244 = vmatpush1.msra.mxu0 %v122
    %245 = vmatprep.subr.mxu0 0.0
    %246 = vmatpush1.msra.mxu0 %v121
    %247 = vmatprep.subr.mxu0 0.0
    %248 = vmatpush2.msra.mxu0 0.0
    %249 = vmatprep.subr.mxu0 0.0
    %250 = vmatpush2.msra.mxu0 0.0
    %251 = vmatprep.subr.mxu0 0.0
    %252 = vmatpush2.msra.mxu0 0.0
    %253 = vmatprep.subr.mxu0 0.0
    %254 = vmatpush2.msra.mxu0 0.0
    %255 = vmatprep.subr.mxu0 0.0
    %256 = vmatpush2.msra.mxu0 0.0
    %257 = vmatprep.subr.mxu0 0.0
    %258 = vmatpush2.msra.mxu0 0.0
    %259 = vmatprep.subr.mxu0 0.0
    %260 = vmatpush2.msra.mxu0 0.0
    %261 = vmatprep.subr.mxu0 0.0
    %262 = vmatpush2.msra.mxu0 0.0
    %263 = vmatprep.subr.mxu0 0.0
    %264 = vmatpush2.msra.mxu0 0.0
    %265 = vmatprep.subr.mxu0 0.0
    %266 = vmatpush2.msra.mxu0 0.0
    %267 = vmatprep.subr.mxu0 0.0
    %268 = vmatpush2.msra.mxu0 0.0
    %269 = vmatprep.subr.mxu0 0.0
    %270 = vmatpush2.msra.mxu0 0.0
    %271 = vmatprep.subr.mxu0 0.0
    %272 = vmatpush2.msra.mxu0 0.0
    %273 = vmatprep.subr.mxu0 0.0
    %274 = vmatpush2.msra.mxu0 0.0
    %275 = vmatprep.subr.mxu0 0.0
    %276 = vmatpush2.msra.mxu0 0.0
    %277 = vmatprep.subr.mxu0 0.0
    %278 = vmatpush2.msra.mxu0 0.0
    %279 = vmatprep.mubr.f32.mxu0 0.0
    %280 = vmatmul.mubr.f32.gmra.mxu0 %v210
    %v281 = vpop.f32.mrf.mxu0
    %v282 = vadd.f32 %v201, %v281
    %v283 = vpop.f32.mrf.mxu0
    %284 = vmatprep.mubr.f32.mxu0 0.0
    %285 = vmatmul.mubr.f32.gmra.mxu0 %v213
    %v286 = vpop.f32.mrf.mxu0
    %v287 = vadd.f32 %v206, %v286
    %v288 = vpop.f32.mrf.mxu0
    %289 = vdwg.mxu0
    %v290 = vld [vmem:[%s6] sm:$0x1]
    %v292 = vlaneseq
    %v293 = vshrl.u32 %v292, 7
    %v294 = vsub.s32 0, %v293
    %v295 = vrot.slane %v290, %v294
    %v297 = vadd.f32 %v282, %v295
    %v298 = vadd.f32 %v287, %v295
    %v299 = vsel %vm127, %v297, -inf
    %300 = vmax.xlane.f32.xlu0 %v299
    %v301 = vpop.xlane.xlu0 %300
    %v302 = vsel %vm127, %v298, -inf
    %303 = vmax.xlane.f32.xlu0 %v302
    %v304 = vpop.xlane.xlu0 %303
    %v305 = vsub.f32 %v297, %v301
    %v306 = vsub.f32 %v298, %v304
    %v307 = vmul.f32 %v305, 1.442695
    %v308 = vpow.pop %v307
    %v309 = vmul.f32 %v306, 1.442695
    %v310 = vpow.pop %v309
    %v311 = vsel %vm127, %v308, 0.0
    %312 = vadd.xlane.f32.xlu0 %v311
    %v313 = vpop.xlane.xlu0 %312
    %v314 = vsel %vm127, %v310, 0.0
    %315 = vadd.xlane.f32.xlu0 %v314
    %v316 = vpop.xlane.xlu0 %315
    %v317 = vlog2.pop %v313
    %v318 = vmul.f32 %v317, 0.6931472
    %v319 = vlog2.pop %v316
    %v320 = vmul.f32 %v319, 0.6931472
    %v321 = vsub.f32 %v305, %v318
    %v322 = vsub.f32 %v306, %v320
    %323 = vst.msk [vmem:[#allocation2] sm:$0xff] %vm127, %v321
    %324 = vst.msk [vmem:[#allocation2 + $0x8] sm:$0xff] %vm127, %v322
    // Predicated region
    $region30: #{rnn_sequence_forward.5} parent=1 // pred_check
      _
    $region31: #{rnn_sequence_forward.5} parent=1 // pred_check_branch
      %326 = sbr.rel (0) target = $region33
    $region32: #{rnn_sequence_forward.5} parent=1 // pred_region
      %s328 = ssub.s32 256, 256
      %329 = vsyncadd [#allocation3], %s328
      %s330 = sshll.u32 [#allocation2], 4
      %s331 = int_to_ptr.vmem [resolvable:$true] %s330
      %336 = dma.vmem_to_hbm [thread:$0]  %s331, 256, %s7, [#allocation3], 128, 128, 8
    $region33: #{rnn_sequence_forward.5} parent=1 // pred_fallthru
      _
    // Predicated region
    $region34: #{rnn_sequence_forward.5} parent=1 // pred_check
      _
    $region35: #{rnn_sequence_forward.5} parent=1 // pred_check_branch
      %338 = sbr.rel (0) target = $region37
    $region36: #{rnn_sequence_forward.5} parent=1 // pred_region
      %339 = dma.done [#allocation3], 256
    $region37: #{rnn_sequence_forward.5} parent=1 // pred_fallthru
      _
    %340 = vsyncpa [#allocation3], 1

</llo_original>
